<compile_context>
chip_gen: v5e
topology: v5e:2x2
jax: 0.10.0
libtpu: 0.0.40
codegen_flags: <defaults>
</compile_context>

<pallas_src>
from functools import partial

import jax
import jax.numpy as jnp
from jax.experimental import pallas as pl
from jax.experimental.pallas import tpu as pltpu

# -------- model config: DeiT-tiny-distilled structure, scaled to small test sizes ----
IMG = 16                 # img_size (PATCH_SIZE in the reference code)
PATCH = 8                # patch-embed conv kernel == stride
IN_CH = 3
EMBED = 32               # embed_dim (192 in real deit-tiny)
DEPTH = 2                # 12 in real deit-tiny
HEADS = 2                # 3 in real deit-tiny
HEAD_DIM = EMBED // HEADS
MLP = 4 * EMBED          # mlp_ratio = 4
GRID_P = IMG // PATCH
NUM_PATCHES = GRID_P * GRID_P
TOKENS = NUM_PATCHES + 2  # cls + dist + patches
PATCH_FEAT = IN_CH * PATCH * PATCH
SCALE = HEAD_DIM ** -0.5
LN_EPS = 1e-6            # timm ViT uses LayerNorm(eps=1e-6)
NEG_INF = -1e30


def _vmem_spec():
    return pl.BlockSpec(memory_space=pltpu.MemorySpace.VMEM)


def _layernorm(x, w, b):
    mu = jnp.mean(x, axis=-1, keepdims=True)
    var = jnp.mean((x - mu) ** 2, axis=-1, keepdims=True)
    return (x - mu) * jax.lax.rsqrt(var + LN_EPS) * w + b


# ---------------------------------------------------------------------------
# The single fused kernel.
# Activations live as a [B*T, D] slab; attention across images is disabled by
# a block-diagonal additive mask.  Depth / head loops are short static Python
# loops (fully unrolled at trace time), weights are stacked [DEPTH, ...].
# ---------------------------------------------------------------------------
def deit_fused_kernel(paug_ref, pw_ref, init_ref, mask_ref, sel_ref,
                      ln1w_ref, ln1b_ref,
                      wq_ref, wk_ref, wv_ref, bq_ref, bk_ref, bv_ref,
                      wo_ref, bo_ref,
                      ln2w_ref, ln2b_ref,
                      fc1w_ref, fc1b_ref, fc2w_ref, fc2b_ref,
                      nw_ref, nb_ref, o_ref):
    # ---- patch embedding; cls/dist tokens + pos-embed + conv bias are pre-folded
    #      into init_ref, and the cls/dist rows of paug are zero features ----
    x = (jnp.dot(paug_ref[...], pw_ref[...], preferred_element_type=jnp.float32)
         + init_ref[...])                                      # [B*T, D]
    mask = mask_ref[...]                                       # [B*T, B*T] additive

    for d in range(DEPTH):
        # ---------------- multi-head self attention (pre-LN) ----------------
        h = _layernorm(x, ln1w_ref[d], ln1b_ref[d])
        attn = jnp.zeros_like(x)
        for hd in range(HEADS):
            q = (jnp.dot(h, wq_ref[d, hd], preferred_element_type=jnp.float32)
                 + bq_ref[d, hd]) * SCALE                      # scale folded into q
            k = (jnp.dot(h, wk_ref[d, hd], preferred_element_type=jnp.float32)
                 + bk_ref[d, hd])
            v = (jnp.dot(h, wv_ref[d, hd], preferred_element_type=jnp.float32)
                 + bv_ref[d, hd])
            s = jax.lax.dot_general(q, k, (((1,), (1,)), ((), ())),
                                    preferred_element_type=jnp.float32) + mask
            s = s - jnp.max(s, axis=-1, keepdims=True)
            p = jnp.exp(s)
            p = p * pl.reciprocal(jnp.sum(p, axis=-1, keepdims=True), approx=True)
            oh = jnp.dot(p, v, preferred_element_type=jnp.float32)
            # fold this head's output through its slice of the proj weight
            attn = attn + jnp.dot(oh, wo_ref[d, hd],
                                  preferred_element_type=jnp.float32)
        x = x + attn + bo_ref[d]

        # ------------------------------ MLP (pre-LN) ------------------------
        h2 = _layernorm(x, ln2w_ref[d], ln2b_ref[d])
        h2 = jnp.dot(h2, fc1w_ref[d], preferred_element_type=jnp.float32) + fc1b_ref[d]
        # TODO(synk): timm nn.GELU is exact erf-GELU; tanh-approx GELU used here for Mosaic lowering safety.
        h2 = 0.5 * h2 * (1.0 + jnp.tanh(0.7978845608028654 *
                                        (h2 + 0.044715 * h2 * h2 * h2)))
        h2 = jnp.dot(h2, fc2w_ref[d], preferred_element_type=jnp.float32) + fc2b_ref[d]
        x = x + h2

    # ---- final LayerNorm on the CLS rows only; row-gather expressed as a
    #      one-hot matmul so no strided sublane slicing is needed ----
    cls = jnp.dot(sel_ref[...], x, preferred_element_type=jnp.float32)   # [B, D]
    o_ref[...] = _layernorm(cls, nw_ref[...], nb_ref[...])


# ---------------------------------------------------------------------------
# Parameter init (deterministic, synthetic — shapes follow the module's __init__)
# ---------------------------------------------------------------------------
def init_params(key):
    ks = jax.random.split(key, 8 + DEPTH)

    def nrm(k, shape):
        return 0.02 * jax.random.normal(k, shape, jnp.float32)

    params = dict(
        patch_w=nrm(ks[0], (PATCH_FEAT, EMBED)),   # conv (D,C,P,P) flattened^T
        patch_b=jnp.zeros((1, EMBED), jnp.float32),
        cls_token=nrm(ks[1], (1, 1, EMBED)),
        dist_token=nrm(ks[2], (1, 1, EMBED)),
        pos_embed=nrm(ks[3], (1, TOKENS, EMBED)),
        norm_w=jnp.ones((1, EMBED), jnp.float32),
        norm_b=jnp.zeros((1, EMBED), jnp.float32),
        blocks=[],
    )
    for d in range(DEPTH):
        bk = jax.random.split(ks[8 + d], 4)
        params["blocks"].append(dict(
            ln1_w=jnp.ones((1, EMBED), jnp.float32),
            ln1_b=jnp.zeros((1, EMBED), jnp.float32),
            qkv_w=nrm(bk[0], (EMBED, 3 * EMBED)),
            qkv_b=jnp.zeros((1, 3 * EMBED), jnp.float32),
            proj_w=nrm(bk[1], (EMBED, EMBED)),
            proj_b=jnp.zeros((1, EMBED), jnp.float32),
            ln2_w=jnp.ones((1, EMBED), jnp.float32),
            ln2_b=jnp.zeros((1, EMBED), jnp.float32),
            fc1_w=nrm(bk[2], (EMBED, MLP)),
            fc1_b=jnp.zeros((1, MLP), jnp.float32),
            fc2_w=nrm(bk[3], (MLP, EMBED)),
            fc2_b=jnp.zeros((1, EMBED), jnp.float32),
        ))
    return params


# ---------------------------------------------------------------------------
# Host-side weight restructuring helpers (done once inside jit; tiny arrays)
# ---------------------------------------------------------------------------
def _stack(blocks, key):
    return jnp.stack([blk[key] for blk in blocks], axis=0)


def _split_heads_w(qkv_w, part):
    w = qkv_w[:, part * EMBED:(part + 1) * EMBED]                 # [D, D]
    return w.reshape(EMBED, HEADS, HEAD_DIM).transpose(1, 0, 2)   # [H, D, Dh]


def _split_heads_b(qkv_b, part):
    b = qkv_b[:, part * EMBED:(part + 1) * EMBED]                 # [1, D]
    return b.reshape(HEADS, HEAD_DIM)[:, None, :]                 # [H, 1, Dh]


# ---------------------------------------------------------------------------
# Forward pass == DeiT_Backbone.forward: forward_features(x)[:, 0, :]
# ---------------------------------------------------------------------------
def deit_backbone_forward(x, params, patch_count=None):
    del patch_count  # unused in the reference forward as well
    b = x.shape[0]
    bt = b * TOKENS

    # conv(k=P, stride=P) -> flatten(2) -> transpose(1,2)  ==  im2col + matmul.
    patches = x.reshape(b, IN_CH, GRID_P, PATCH, GRID_P, PATCH)
    patches = patches.transpose(0, 2, 4, 1, 3, 5).reshape(b, NUM_PATCHES, PATCH_FEAT)
    # Two zero-feature rows per image stand in for the cls/dist slots so the whole
    # token slab is produced by one dense [B*T, F] @ [F, D] matmul in-kernel.
    paug = jnp.concatenate(
        [jnp.zeros((b, 2, PATCH_FEAT), jnp.float32), patches], axis=1
    ).reshape(bt, PATCH_FEAT)

    # cls/dist tokens, positional embedding and the conv bias folded into one
    # additive init tensor (conv bias only on patch rows).
    pos = params["pos_embed"]                                     # [1, T, D]
    base = jnp.concatenate(
        [params["cls_token"] + pos[:, 0:1],
         params["dist_token"] + pos[:, 1:2],
         pos[:, 2:] + params["patch_b"][None]], axis=1)           # [1, T, D]
    init_full = jnp.broadcast_to(base, (b, TOKENS, EMBED)).reshape(bt, EMBED)

    # block-diagonal additive mask: tokens only attend within their own image.
    row_img = jnp.arange(bt) // TOKENS
    mask = jnp.where(row_img[:, None] == row_img[None, :],
                     0.0, NEG_INF).astype(jnp.float32)            # [B*T, B*T]
    # one-hot row selector for the CLS token of each image (gather-as-matmul).
    sel = (jnp.arange(bt)[None, :] ==
           (jnp.arange(b) * TOKENS)[:, None]).astype(jnp.float32)  # [B, B*T]

    blocks = params["blocks"]
    wq = jnp.stack([_split_heads_w(blk["qkv_w"], 0) for blk in blocks])   # [L,H,D,Dh]
    wk = jnp.stack([_split_heads_w(blk["qkv_w"], 1) for blk in blocks])
    wv = jnp.stack([_split_heads_w(blk["qkv_w"], 2) for blk in blocks])
    bq = jnp.stack([_split_heads_b(blk["qkv_b"], 0) for blk in blocks])   # [L,H,1,Dh]
    bk = jnp.stack([_split_heads_b(blk["qkv_b"], 1) for blk in blocks])
    bv = jnp.stack([_split_heads_b(blk["qkv_b"], 2) for blk in blocks])
    wo = jnp.stack([blk["proj_w"].reshape(HEADS, HEAD_DIM, EMBED)
                    for blk in blocks])                                   # [L,H,Dh,D]
    bo = _stack(blocks, "proj_b")                                         # [L,1,D]
    ln1w, ln1b = _stack(blocks, "ln1_w"), _stack(blocks, "ln1_b")
    ln2w, ln2b = _stack(blocks, "ln2_w"), _stack(blocks, "ln2_b")
    fc1w, fc1b = _stack(blocks, "fc1_w"), _stack(blocks, "fc1_b")
    fc2w, fc2b = _stack(blocks, "fc2_w"), _stack(blocks, "fc2_b")

    return pl.pallas_call(
        deit_fused_kernel,
        out_shape=jax.ShapeDtypeStruct((b, EMBED), jnp.float32),
        in_specs=[_vmem_spec()] * 23,
        out_specs=_vmem_spec(),
    )(paug, params["patch_w"], init_full, mask, sel,
      ln1w, ln1b, wq, wk, wv, bq, bk, bv, wo, bo,
      ln2w, ln2b, fc1w, fc1b, fc2w, fc2b,
      params["norm_w"], params["norm_b"])


if __name__ == "__main__":
    key = jax.random.PRNGKey(0)
    pkey, xkey = jax.random.split(key)
    params = init_params(pkey)
    x = jax.random.normal(xkey, (2, IN_CH, IMG, IMG), jnp.float32)

    fwd = jax.jit(partial(deit_backbone_forward, patch_count=4))
    cls = fwd(x, params)
    cls = jax.block_until_ready(cls)
    assert cls.shape == (2, EMBED), cls.shape
    assert bool(jnp.all(jnp.isfinite(cls)))
    print("KERNEL_OK")
</pallas_src>

<mosaic_0001>
module attributes {stable_mosaic.version = 11 : i64} {
  func.func @deit_fused_kernel(%arg0: memref<12x192xf32, #tpu.memory_space<vmem>>, %arg1: memref<192x32xf32, #tpu.memory_space<vmem>>, %arg2: memref<12x32xf32, #tpu.memory_space<vmem>>, %arg3: memref<12x12xf32, #tpu.memory_space<vmem>>, %arg4: memref<2x12xf32, #tpu.memory_space<vmem>>, %arg5: memref<2x1x32xf32, #tpu.memory_space<vmem>>, %arg6: memref<2x1x32xf32, #tpu.memory_space<vmem>>, %arg7: memref<2x2x32x16xf32, #tpu.memory_space<vmem>>, %arg8: memref<2x2x32x16xf32, #tpu.memory_space<vmem>>, %arg9: memref<2x2x32x16xf32, #tpu.memory_space<vmem>>, %arg10: memref<2x2x1x16xf32, #tpu.memory_space<vmem>>, %arg11: memref<2x2x1x16xf32, #tpu.memory_space<vmem>>, %arg12: memref<2x2x1x16xf32, #tpu.memory_space<vmem>>, %arg13: memref<2x2x16x32xf32, #tpu.memory_space<vmem>>, %arg14: memref<2x1x32xf32, #tpu.memory_space<vmem>>, %arg15: memref<2x1x32xf32, #tpu.memory_space<vmem>>, %arg16: memref<2x1x32xf32, #tpu.memory_space<vmem>>, %arg17: memref<2x32x128xf32, #tpu.memory_space<vmem>>, %arg18: memref<2x1x128xf32, #tpu.memory_space<vmem>>, %arg19: memref<2x128x32xf32, #tpu.memory_space<vmem>>, %arg20: memref<2x1x32xf32, #tpu.memory_space<vmem>>, %arg21: memref<1x32xf32, #tpu.memory_space<vmem>>, %arg22: memref<1x32xf32, #tpu.memory_space<vmem>>, %arg23: memref<2x32xf32, #tpu.memory_space<vmem>>) attributes {dimension_semantics = [], scalar_prefetch = 0 : i64, scratch_operands = 0 : i64, tpu.core_type = #tpu.core_type<tc>} {
    %c0 = arith.constant 0 : index
    %c0_0 = arith.constant 0 : index
    %0 = vector.load %arg0[%c0, %c0_0] : memref<12x192xf32, #tpu.memory_space<vmem>>, vector<12x192xf32>
    %c0_1 = arith.constant 0 : index
    %c0_2 = arith.constant 0 : index
    %1 = vector.load %arg1[%c0_1, %c0_2] : memref<192x32xf32, #tpu.memory_space<vmem>>, vector<192x32xf32>
    %cst = arith.constant dense<0.000000e+00> : vector<12x32xf32>
    %2 = tpu.matmul %0, %1, %cst {dimension_numbers = #tpu.dot_dimension_numbers<[1], [0], [0], [1], [0, 0, 1, 1], [], []>} : vector<12x192xf32>, vector<192x32xf32>, vector<12x32xf32> -> vector<12x32xf32>
    %c0_3 = arith.constant 0 : index
    %c0_4 = arith.constant 0 : index
    %3 = vector.load %arg2[%c0_3, %c0_4] : memref<12x32xf32, #tpu.memory_space<vmem>>, vector<12x32xf32>
    %4 = arith.addf %2, %3 : vector<12x32xf32>
    %c0_5 = arith.constant 0 : index
    %c0_6 = arith.constant 0 : index
    %5 = vector.load %arg3[%c0_5, %c0_6] : memref<12x12xf32, #tpu.memory_space<vmem>>, vector<12x12xf32>
    %c0_7 = arith.constant 0 : index
    %c0_8 = arith.constant 0 : index
    %c0_9 = arith.constant 0 : index
    %6 = vector.load %arg5[%c0_7, %c0_8, %c0_9] : memref<2x1x32xf32, #tpu.memory_space<vmem>>, vector<1x1x32xf32>
    %7 = vector.shape_cast %6 : vector<1x1x32xf32> to vector<1x32xf32>
    %c0_10 = arith.constant 0 : index
    %c0_11 = arith.constant 0 : index
    %c0_12 = arith.constant 0 : index
    %8 = vector.load %arg6[%c0_10, %c0_11, %c0_12] : memref<2x1x32xf32, #tpu.memory_space<vmem>>, vector<1x1x32xf32>
    %9 = vector.shape_cast %8 : vector<1x1x32xf32> to vector<1x32xf32>
    %cst_13 = arith.constant dense<0.000000e+00> : vector<12xf32>
    %10 = vector.multi_reduction <add>, %4, %cst_13 [1] : vector<12x32xf32> to vector<12xf32>
    %11 = vector.shape_cast %10 : vector<12xf32> to vector<12x1xf32>
    %cst_14 = arith.constant 3.200000e+01 : f32
    %12 = vector.broadcast %cst_14 : f32 to vector<12x1xf32>
    %13 = arith.divf %11, %12 : vector<12x1xf32>
    %14 = vector.broadcast %13 : vector<12x1xf32> to vector<12x32xf32>
    %15 = arith.subf %4, %14 : vector<12x32xf32>
    %16 = arith.mulf %15, %15 : vector<12x32xf32>
    %cst_15 = arith.constant dense<0.000000e+00> : vector<12xf32>
    %17 = vector.multi_reduction <add>, %16, %cst_15 [1] : vector<12x32xf32> to vector<12xf32>
    %18 = vector.shape_cast %17 : vector<12xf32> to vector<12x1xf32>
    %cst_16 = arith.constant 3.200000e+01 : f32
    %19 = vector.broadcast %cst_16 : f32 to vector<12x1xf32>
    %20 = arith.divf %18, %19 : vector<12x1xf32>
    %21 = vector.broadcast %13 : vector<12x1xf32> to vector<12x32xf32>
    %22 = arith.subf %4, %21 : vector<12x32xf32>
    %cst_17 = arith.constant 9.99999997E-7 : f32
    %23 = vector.broadcast %cst_17 : f32 to vector<12x1xf32>
    %24 = arith.addf %20, %23 : vector<12x1xf32>
    %25 = math.rsqrt %24 : vector<12x1xf32>
    %26 = vector.broadcast %25 : vector<12x1xf32> to vector<12x32xf32>
    %27 = arith.mulf %22, %26 : vector<12x32xf32>
    %28 = vector.broadcast %7 : vector<1x32xf32> to vector<12x32xf32>
    %29 = arith.mulf %27, %28 : vector<12x32xf32>
    %30 = vector.broadcast %9 : vector<1x32xf32> to vector<12x32xf32>
    %31 = arith.addf %29, %30 : vector<12x32xf32>
    %cst_18 = arith.constant 0.000000e+00 : f32
    %32 = vector.broadcast %cst_18 : f32 to vector<12x32xf32>
    %c0_19 = arith.constant 0 : index
    %c0_20 = arith.constant 0 : index
    %c0_21 = arith.constant 0 : index
    %c0_22 = arith.constant 0 : index
    %33 = vector.load %arg7[%c0_19, %c0_20, %c0_21, %c0_22] : memref<2x2x32x16xf32, #tpu.memory_space<vmem>>, vector<1x1x32x16xf32>
    %34 = vector.shape_cast %33 : vector<1x1x32x16xf32> to vector<32x16xf32>
    %cst_23 = arith.constant dense<0.000000e+00> : vector<12x16xf32>
    %35 = tpu.matmul %31, %34, %cst_23 {dimension_numbers = #tpu.dot_dimension_numbers<[1], [0], [0], [1], [0, 0, 1, 1], [], []>} : vector<12x32xf32>, vector<32x16xf32>, vector<12x16xf32> -> vector<12x16xf32>
    %c0_24 = arith.constant 0 : index
    %c0_25 = arith.constant 0 : index
    %c0_26 = arith.constant 0 : index
    %c0_27 = arith.constant 0 : index
    %36 = vector.load %arg10[%c0_24, %c0_25, %c0_26, %c0_27] : memref<2x2x1x16xf32, #tpu.memory_space<vmem>>, vector<1x1x1x16xf32>
    %37 = vector.shape_cast %36 : vector<1x1x1x16xf32> to vector<1x16xf32>
    %38 = vector.broadcast %37 : vector<1x16xf32> to vector<12x16xf32>
    %39 = arith.addf %35, %38 : vector<12x16xf32>
    %cst_28 = arith.constant 2.500000e-01 : f32
    %40 = vector.broadcast %cst_28 : f32 to vector<12x16xf32>
    %41 = arith.mulf %39, %40 : vector<12x16xf32>
    %c0_29 = arith.constant 0 : index
    %c0_30 = arith.constant 0 : index
    %c0_31 = arith.constant 0 : index
    %c0_32 = arith.constant 0 : index
    %42 = vector.load %arg8[%c0_29, %c0_30, %c0_31, %c0_32] : memref<2x2x32x16xf32, #tpu.memory_space<vmem>>, vector<1x1x32x16xf32>
    %43 = vector.shape_cast %42 : vector<1x1x32x16xf32> to vector<32x16xf32>
    %cst_33 = arith.constant dense<0.000000e+00> : vector<12x16xf32>
    %44 = tpu.matmul %31, %43, %cst_33 {dimension_numbers = #tpu.dot_dimension_numbers<[1], [0], [0], [1], [0, 0, 1, 1], [], []>} : vector<12x32xf32>, vector<32x16xf32>, vector<12x16xf32> -> vector<12x16xf32>
    %c0_34 = arith.constant 0 : index
    %c0_35 = arith.constant 0 : index
    %c0_36 = arith.constant 0 : index
    %c0_37 = arith.constant 0 : index
    %45 = vector.load %arg11[%c0_34, %c0_35, %c0_36, %c0_37] : memref<2x2x1x16xf32, #tpu.memory_space<vmem>>, vector<1x1x1x16xf32>
    %46 = vector.shape_cast %45 : vector<1x1x1x16xf32> to vector<1x16xf32>
    %47 = vector.broadcast %46 : vector<1x16xf32> to vector<12x16xf32>
    %48 = arith.addf %44, %47 : vector<12x16xf32>
    %c0_38 = arith.constant 0 : index
    %c0_39 = arith.constant 0 : index
    %c0_40 = arith.constant 0 : index
    %c0_41 = arith.constant 0 : index
    %49 = vector.load %arg9[%c0_38, %c0_39, %c0_40, %c0_41] : memref<2x2x32x16xf32, #tpu.memory_space<vmem>>, vector<1x1x32x16xf32>
    %50 = vector.shape_cast %49 : vector<1x1x32x16xf32> to vector<32x16xf32>
    %cst_42 = arith.constant dense<0.000000e+00> : vector<12x16xf32>
    %51 = tpu.matmul %31, %50, %cst_42 {dimension_numbers = #tpu.dot_dimension_numbers<[1], [0], [0], [1], [0, 0, 1, 1], [], []>} : vector<12x32xf32>, vector<32x16xf32>, vector<12x16xf32> -> vector<12x16xf32>
    %c0_43 = arith.constant 0 : index
    %c0_44 = arith.constant 0 : index
    %c0_45 = arith.constant 0 : index
    %c0_46 = arith.constant 0 : index
    %52 = vector.load %arg12[%c0_43, %c0_44, %c0_45, %c0_46] : memref<2x2x1x16xf32, #tpu.memory_space<vmem>>, vector<1x1x1x16xf32>
    %53 = vector.shape_cast %52 : vector<1x1x1x16xf32> to vector<1x16xf32>
    %54 = vector.broadcast %53 : vector<1x16xf32> to vector<12x16xf32>
    %55 = arith.addf %51, %54 : vector<12x16xf32>
    %cst_47 = arith.constant dense<0.000000e+00> : vector<12x12xf32>
    %56 = tpu.matmul %41, %48, %cst_47 {dimension_numbers = #tpu.dot_dimension_numbers<[1], [1], [0], [0], [0, 0, 1, 0], [], []>} : vector<12x16xf32>, vector<12x16xf32>, vector<12x12xf32> -> vector<12x12xf32>
    %57 = arith.addf %56, %5 : vector<12x12xf32>
    %cst_48 = arith.constant dense<0xFF800000> : vector<12xf32>
    %58 = vector.multi_reduction <maximumf>, %57, %cst_48 [1] : vector<12x12xf32> to vector<12xf32>
    %59 = vector.shape_cast %58 : vector<12xf32> to vector<12x1xf32>
    %60 = vector.broadcast %59 : vector<12x1xf32> to vector<12x12xf32>
    %61 = arith.subf %57, %60 : vector<12x12xf32>
    %62 = math.exp %61 : vector<12x12xf32>
    %cst_49 = arith.constant dense<0.000000e+00> : vector<12xf32>
    %63 = vector.multi_reduction <add>, %62, %cst_49 [1] : vector<12x12xf32> to vector<12xf32>
    %64 = vector.shape_cast %63 : vector<12xf32> to vector<12x1xf32>
    %65 = tpu.reciprocal %64 {approx = true} : vector<12x1xf32> -> vector<12x1xf32>
    %66 = vector.broadcast %65 : vector<12x1xf32> to vector<12x12xf32>
    %67 = arith.mulf %62, %66 : vector<12x12xf32>
    %cst_50 = arith.constant dense<0.000000e+00> : vector<12x16xf32>
    %68 = tpu.matmul %67, %55, %cst_50 {dimension_numbers = #tpu.dot_dimension_numbers<[1], [0], [0], [1], [0, 0, 1, 1], [], []>} : vector<12x12xf32>, vector<12x16xf32>, vector<12x16xf32> -> vector<12x16xf32>
    %c0_51 = arith.constant 0 : index
    %c0_52 = arith.constant 0 : index
    %c0_53 = arith.constant 0 : index
    %c0_54 = arith.constant 0 : index
    %69 = vector.load %arg13[%c0_51, %c0_52, %c0_53, %c0_54] : memref<2x2x16x32xf32, #tpu.memory_space<vmem>>, vector<1x1x16x32xf32>
    %70 = vector.shape_cast %69 : vector<1x1x16x32xf32> to vector<16x32xf32>
    %cst_55 = arith.constant dense<0.000000e+00> : vector<12x32xf32>
    %71 = tpu.matmul %68, %70, %cst_55 {dimension_numbers = #tpu.dot_dimension_numbers<[1], [0], [0], [1], [0, 0, 1, 1], [], []>} : vector<12x16xf32>, vector<16x32xf32>, vector<12x32xf32> -> vector<12x32xf32>
    %72 = arith.addf %32, %71 : vector<12x32xf32>
    %c0_56 = arith.constant 0 : index
    %c1 = arith.constant 1 : index
    %c0_57 = arith.constant 0 : index
    %c0_58 = arith.constant 0 : index
    %73 = vector.load %arg7[%c0_56, %c1, %c0_57, %c0_58] : memref<2x2x32x16xf32, #tpu.memory_space<vmem>>, vector<1x1x32x16xf32>
    %74 = vector.shape_cast %73 : vector<1x1x32x16xf32> to vector<32x16xf32>
    %cst_59 = arith.constant dense<0.000000e+00> : vector<12x16xf32>
    %75 = tpu.matmul %31, %74, %cst_59 {dimension_numbers = #tpu.dot_dimension_numbers<[1], [0], [0], [1], [0, 0, 1, 1], [], []>} : vector<12x32xf32>, vector<32x16xf32>, vector<12x16xf32> -> vector<12x16xf32>
    %c0_60 = arith.constant 0 : index
    %c1_61 = arith.constant 1 : index
    %c0_62 = arith.constant 0 : index
    %c0_63 = arith.constant 0 : index
    %76 = vector.load %arg10[%c0_60, %c1_61, %c0_62, %c0_63] : memref<2x2x1x16xf32, #tpu.memory_space<vmem>>, vector<1x1x1x16xf32>
    %77 = vector.shape_cast %76 : vector<1x1x1x16xf32> to vector<1x16xf32>
    %78 = vector.broadcast %77 : vector<1x16xf32> to vector<12x16xf32>
    %79 = arith.addf %75, %78 : vector<12x16xf32>
    %cst_64 = arith.constant 2.500000e-01 : f32
    %80 = vector.broadcast %cst_64 : f32 to vector<12x16xf32>
    %81 = arith.mulf %79, %80 : vector<12x16xf32>
    %c0_65 = arith.constant 0 : index
    %c1_66 = arith.constant 1 : index
    %c0_67 = arith.constant 0 : index
    %c0_68 = arith.constant 0 : index
    %82 = vector.load %arg8[%c0_65, %c1_66, %c0_67, %c0_68] : memref<2x2x32x16xf32, #tpu.memory_space<vmem>>, vector<1x1x32x16xf32>
    %83 = vector.shape_cast %82 : vector<1x1x32x16xf32> to vector<32x16xf32>
    %cst_69 = arith.constant dense<0.000000e+00> : vector<12x16xf32>
    %84 = tpu.matmul %31, %83, %cst_69 {dimension_numbers = #tpu.dot_dimension_numbers<[1], [0], [0], [1], [0, 0, 1, 1], [], []>} : vector<12x32xf32>, vector<32x16xf32>, vector<12x16xf32> -> vector<12x16xf32>
    %c0_70 = arith.constant 0 : index
    %c1_71 = arith.constant 1 : index
    %c0_72 = arith.constant 0 : index
    %c0_73 = arith.constant 0 : index
    %85 = vector.load %arg11[%c0_70, %c1_71, %c0_72, %c0_73] : memref<2x2x1x16xf32, #tpu.memory_space<vmem>>, vector<1x1x1x16xf32>
    %86 = vector.shape_cast %85 : vector<1x1x1x16xf32> to vector<1x16xf32>
    %87 = vector.broadcast %86 : vector<1x16xf32> to vector<12x16xf32>
    %88 = arith.addf %84, %87 : vector<12x16xf32>
    %c0_74 = arith.constant 0 : index
    %c1_75 = arith.constant 1 : index
    %c0_76 = arith.constant 0 : index
    %c0_77 = arith.constant 0 : index
    %89 = vector.load %arg9[%c0_74, %c1_75, %c0_76, %c0_77] : memref<2x2x32x16xf32, #tpu.memory_space<vmem>>, vector<1x1x32x16xf32>
    %90 = vector.shape_cast %89 : vector<1x1x32x16xf32> to vector<32x16xf32>
    %cst_78 = arith.constant dense<0.000000e+00> : vector<12x16xf32>
    %91 = tpu.matmul %31, %90, %cst_78 {dimension_numbers = #tpu.dot_dimension_numbers<[1], [0], [0], [1], [0, 0, 1, 1], [], []>} : vector<12x32xf32>, vector<32x16xf32>, vector<12x16xf32> -> vector<12x16xf32>
    %c0_79 = arith.constant 0 : index
    %c1_80 = arith.constant 1 : index
    %c0_81 = arith.constant 0 : index
    %c0_82 = arith.constant 0 : index
    %92 = vector.load %arg12[%c0_79, %c1_80, %c0_81, %c0_82] : memref<2x2x1x16xf32, #tpu.memory_space<vmem>>, vector<1x1x1x16xf32>
    %93 = vector.shape_cast %92 : vector<1x1x1x16xf32> to vector<1x16xf32>
    %94 = vector.broadcast %93 : vector<1x16xf32> to vector<12x16xf32>
    %95 = arith.addf %91, %94 : vector<12x16xf32>
    %cst_83 = arith.constant dense<0.000000e+00> : vector<12x12xf32>
    %96 = tpu.matmul %81, %88, %cst_83 {dimension_numbers = #tpu.dot_dimension_numbers<[1], [1], [0], [0], [0, 0, 1, 0], [], []>} : vector<12x16xf32>, vector<12x16xf32>, vector<12x12xf32> -> vector<12x12xf32>
    %97 = arith.addf %96, %5 : vector<12x12xf32>
    %cst_84 = arith.constant dense<0xFF800000> : vector<12xf32>
    %98 = vector.multi_reduction <maximumf>, %97, %cst_84 [1] : vector<12x12xf32> to vector<12xf32>
    %99 = vector.shape_cast %98 : vector<12xf32> to vector<12x1xf32>
    %100 = vector.broadcast %99 : vector<12x1xf32> to vector<12x12xf32>
    %101 = arith.subf %97, %100 : vector<12x12xf32>
    %102 = math.exp %101 : vector<12x12xf32>
    %cst_85 = arith.constant dense<0.000000e+00> : vector<12xf32>
    %103 = vector.multi_reduction <add>, %102, %cst_85 [1] : vector<12x12xf32> to vector<12xf32>
    %104 = vector.shape_cast %103 : vector<12xf32> to vector<12x1xf32>
    %105 = tpu.reciprocal %104 {approx = true} : vector<12x1xf32> -> vector<12x1xf32>
    %106 = vector.broadcast %105 : vector<12x1xf32> to vector<12x12xf32>
    %107 = arith.mulf %102, %106 : vector<12x12xf32>
    %cst_86 = arith.constant dense<0.000000e+00> : vector<12x16xf32>
    %108 = tpu.matmul %107, %95, %cst_86 {dimension_numbers = #tpu.dot_dimension_numbers<[1], [0], [0], [1], [0, 0, 1, 1], [], []>} : vector<12x12xf32>, vector<12x16xf32>, vector<12x16xf32> -> vector<12x16xf32>
    %c0_87 = arith.constant 0 : index
    %c1_88 = arith.constant 1 : index
    %c0_89 = arith.constant 0 : index
    %c0_90 = arith.constant 0 : index
    %109 = vector.load %arg13[%c0_87, %c1_88, %c0_89, %c0_90] : memref<2x2x16x32xf32, #tpu.memory_space<vmem>>, vector<1x1x16x32xf32>
    %110 = vector.shape_cast %109 : vector<1x1x16x32xf32> to vector<16x32xf32>
    %cst_91 = arith.constant dense<0.000000e+00> : vector<12x32xf32>
    %111 = tpu.matmul %108, %110, %cst_91 {dimension_numbers = #tpu.dot_dimension_numbers<[1], [0], [0], [1], [0, 0, 1, 1], [], []>} : vector<12x16xf32>, vector<16x32xf32>, vector<12x32xf32> -> vector<12x32xf32>
    %112 = arith.addf %72, %111 : vector<12x32xf32>
    %113 = arith.addf %4, %112 : vector<12x32xf32>
    %c0_92 = arith.constant 0 : index
    %c0_93 = arith.constant 0 : index
    %c0_94 = arith.constant 0 : index
    %114 = vector.load %arg14[%c0_92, %c0_93, %c0_94] : memref<2x1x32xf32, #tpu.memory_space<vmem>>, vector<1x1x32xf32>
    %115 = vector.shape_cast %114 : vector<1x1x32xf32> to vector<1x32xf32>
    %116 = vector.broadcast %115 : vector<1x32xf32> to vector<12x32xf32>
    %117 = arith.addf %113, %116 : vector<12x32xf32>
    %c0_95 = arith.constant 0 : index
    %c0_96 = arith.constant 0 : index
    %c0_97 = arith.constant 0 : index
    %118 = vector.load %arg15[%c0_95, %c0_96, %c0_97] : memref<2x1x32xf32, #tpu.memory_space<vmem>>, vector<1x1x32xf32>
    %119 = vector.shape_cast %118 : vector<1x1x32xf32> to vector<1x32xf32>
    %c0_98 = arith.constant 0 : index
    %c0_99 = arith.constant 0 : index
    %c0_100 = arith.constant 0 : index
    %120 = vector.load %arg16[%c0_98, %c0_99, %c0_100] : memref<2x1x32xf32, #tpu.memory_space<vmem>>, vector<1x1x32xf32>
    %121 = vector.shape_cast %120 : vector<1x1x32xf32> to vector<1x32xf32>
    %cst_101 = arith.constant dense<0.000000e+00> : vector<12xf32>
    %122 = vector.multi_reduction <add>, %117, %cst_101 [1] : vector<12x32xf32> to vector<12xf32>
    %123 = vector.shape_cast %122 : vector<12xf32> to vector<12x1xf32>
    %cst_102 = arith.constant 3.200000e+01 : f32
    %124 = vector.broadcast %cst_102 : f32 to vector<12x1xf32>
    %125 = arith.divf %123, %124 : vector<12x1xf32>
    %126 = vector.broadcast %125 : vector<12x1xf32> to vector<12x32xf32>
    %127 = arith.subf %117, %126 : vector<12x32xf32>
    %128 = arith.mulf %127, %127 : vector<12x32xf32>
    %cst_103 = arith.constant dense<0.000000e+00> : vector<12xf32>
    %129 = vector.multi_reduction <add>, %128, %cst_103 [1] : vector<12x32xf32> to vector<12xf32>
    %130 = vector.shape_cast %129 : vector<12xf32> to vector<12x1xf32>
    %cst_104 = arith.constant 3.200000e+01 : f32
    %131 = vector.broadcast %cst_104 : f32 to vector<12x1xf32>
    %132 = arith.divf %130, %131 : vector<12x1xf32>
    %133 = vector.broadcast %125 : vector<12x1xf32> to vector<12x32xf32>
    %134 = arith.subf %117, %133 : vector<12x32xf32>
    %cst_105 = arith.constant 9.99999997E-7 : f32
    %135 = vector.broadcast %cst_105 : f32 to vector<12x1xf32>
    %136 = arith.addf %132, %135 : vector<12x1xf32>
    %137 = math.rsqrt %136 : vector<12x1xf32>
    %138 = vector.broadcast %137 : vector<12x1xf32> to vector<12x32xf32>
    %139 = arith.mulf %134, %138 : vector<12x32xf32>
    %140 = vector.broadcast %119 : vector<1x32xf32> to vector<12x32xf32>
    %141 = arith.mulf %139, %140 : vector<12x32xf32>
    %142 = vector.broadcast %121 : vector<1x32xf32> to vector<12x32xf32>
    %143 = arith.addf %141, %142 : vector<12x32xf32>
    %c0_106 = arith.constant 0 : index
    %c0_107 = arith.constant 0 : index
    %c0_108 = arith.constant 0 : index
    %144 = vector.load %arg17[%c0_106, %c0_107, %c0_108] : memref<2x32x128xf32, #tpu.memory_space<vmem>>, vector<1x32x128xf32>
    %145 = vector.shape_cast %144 : vector<1x32x128xf32> to vector<32x128xf32>
    %cst_109 = arith.constant dense<0.000000e+00> : vector<12x128xf32>
    %146 = tpu.matmul %143, %145, %cst_109 {dimension_numbers = #tpu.dot_dimension_numbers<[1], [0], [0], [1], [0, 0, 1, 1], [], []>} : vector<12x32xf32>, vector<32x128xf32>, vector<12x128xf32> -> vector<12x128xf32>
    %c0_110 = arith.constant 0 : index
    %c0_111 = arith.constant 0 : index
    %c0_112 = arith.constant 0 : index
    %147 = vector.load %arg18[%c0_110, %c0_111, %c0_112] : memref<2x1x128xf32, #tpu.memory_space<vmem>>, vector<1x1x128xf32>
    %148 = vector.shape_cast %147 : vector<1x1x128xf32> to vector<1x128xf32>
    %149 = vector.broadcast %148 : vector<1x128xf32> to vector<12x128xf32>
    %150 = arith.addf %146, %149 : vector<12x128xf32>
    %cst_113 = arith.constant 5.000000e-01 : f32
    %151 = vector.broadcast %cst_113 : f32 to vector<12x128xf32>
    %152 = arith.mulf %151, %150 : vector<12x128xf32>
    %cst_114 = arith.constant 4.471500e-02 : f32
    %153 = vector.broadcast %cst_114 : f32 to vector<12x128xf32>
    %154 = arith.mulf %153, %150 : vector<12x128xf32>
    %155 = arith.mulf %154, %150 : vector<12x128xf32>
    %156 = arith.mulf %155, %150 : vector<12x128xf32>
    %157 = arith.addf %150, %156 : vector<12x128xf32>
    %cst_115 = arith.constant 0.797884583 : f32
    %158 = vector.broadcast %cst_115 : f32 to vector<12x128xf32>
    %159 = arith.mulf %158, %157 : vector<12x128xf32>
    %160 = math.tanh %159 : vector<12x128xf32>
    %cst_116 = arith.constant 1.000000e+00 : f32
    %161 = vector.broadcast %cst_116 : f32 to vector<12x128xf32>
    %162 = arith.addf %161, %160 : vector<12x128xf32>
    %163 = arith.mulf %152, %162 : vector<12x128xf32>
    %c0_117 = arith.constant 0 : index
    %c0_118 = arith.constant 0 : index
    %c0_119 = arith.constant 0 : index
    %164 = vector.load %arg19[%c0_117, %c0_118, %c0_119] : memref<2x128x32xf32, #tpu.memory_space<vmem>>, vector<1x128x32xf32>
    %165 = vector.shape_cast %164 : vector<1x128x32xf32> to vector<128x32xf32>
    %cst_120 = arith.constant dense<0.000000e+00> : vector<12x32xf32>
    %166 = tpu.matmul %163, %165, %cst_120 {dimension_numbers = #tpu.dot_dimension_numbers<[1], [0], [0], [1], [0, 0, 1, 1], [], []>} : vector<12x128xf32>, vector<128x32xf32>, vector<12x32xf32> -> vector<12x32xf32>
    %c0_121 = arith.constant 0 : index
    %c0_122 = arith.constant 0 : index
    %c0_123 = arith.constant 0 : index
    %167 = vector.load %arg20[%c0_121, %c0_122, %c0_123] : memref<2x1x32xf32, #tpu.memory_space<vmem>>, vector<1x1x32xf32>
    %168 = vector.shape_cast %167 : vector<1x1x32xf32> to vector<1x32xf32>
    %169 = vector.broadcast %168 : vector<1x32xf32> to vector<12x32xf32>
    %170 = arith.addf %166, %169 : vector<12x32xf32>
    %171 = arith.addf %117, %170 : vector<12x32xf32>
    %c1_124 = arith.constant 1 : index
    %c0_125 = arith.constant 0 : index
    %c0_126 = arith.constant 0 : index
    %172 = vector.load %arg5[%c1_124, %c0_125, %c0_126] : memref<2x1x32xf32, #tpu.memory_space<vmem>>, vector<1x1x32xf32>
    %173 = vector.shape_cast %172 : vector<1x1x32xf32> to vector<1x32xf32>
    %c1_127 = arith.constant 1 : index
    %c0_128 = arith.constant 0 : index
    %c0_129 = arith.constant 0 : index
    %174 = vector.load %arg6[%c1_127, %c0_128, %c0_129] : memref<2x1x32xf32, #tpu.memory_space<vmem>>, vector<1x1x32xf32>
    %175 = vector.shape_cast %174 : vector<1x1x32xf32> to vector<1x32xf32>
    %cst_130 = arith.constant dense<0.000000e+00> : vector<12xf32>
    %176 = vector.multi_reduction <add>, %171, %cst_130 [1] : vector<12x32xf32> to vector<12xf32>
    %177 = vector.shape_cast %176 : vector<12xf32> to vector<12x1xf32>
    %cst_131 = arith.constant 3.200000e+01 : f32
    %178 = vector.broadcast %cst_131 : f32 to vector<12x1xf32>
    %179 = arith.divf %177, %178 : vector<12x1xf32>
    %180 = vector.broadcast %179 : vector<12x1xf32> to vector<12x32xf32>
    %181 = arith.subf %171, %180 : vector<12x32xf32>
    %182 = arith.mulf %181, %181 : vector<12x32xf32>
    %cst_132 = arith.constant dense<0.000000e+00> : vector<12xf32>
    %183 = vector.multi_reduction <add>, %182, %cst_132 [1] : vector<12x32xf32> to vector<12xf32>
    %184 = vector.shape_cast %183 : vector<12xf32> to vector<12x1xf32>
    %cst_133 = arith.constant 3.200000e+01 : f32
    %185 = vector.broadcast %cst_133 : f32 to vector<12x1xf32>
    %186 = arith.divf %184, %185 : vector<12x1xf32>
    %187 = vector.broadcast %179 : vector<12x1xf32> to vector<12x32xf32>
    %188 = arith.subf %171, %187 : vector<12x32xf32>
    %cst_134 = arith.constant 9.99999997E-7 : f32
    %189 = vector.broadcast %cst_134 : f32 to vector<12x1xf32>
    %190 = arith.addf %186, %189 : vector<12x1xf32>
    %191 = math.rsqrt %190 : vector<12x1xf32>
    %192 = vector.broadcast %191 : vector<12x1xf32> to vector<12x32xf32>
    %193 = arith.mulf %188, %192 : vector<12x32xf32>
    %194 = vector.broadcast %173 : vector<1x32xf32> to vector<12x32xf32>
    %195 = arith.mulf %193, %194 : vector<12x32xf32>
    %196 = vector.broadcast %175 : vector<1x32xf32> to vector<12x32xf32>
    %197 = arith.addf %195, %196 : vector<12x32xf32>
    %cst_135 = arith.constant 0.000000e+00 : f32
    %198 = vector.broadcast %cst_135 : f32 to vector<12x32xf32>
    %c1_136 = arith.constant 1 : index
    %c0_137 = arith.constant 0 : index
    %c0_138 = arith.constant 0 : index
    %c0_139 = arith.constant 0 : index
    %199 = vector.load %arg7[%c1_136, %c0_137, %c0_138, %c0_139] : memref<2x2x32x16xf32, #tpu.memory_space<vmem>>, vector<1x1x32x16xf32>
    %200 = vector.shape_cast %199 : vector<1x1x32x16xf32> to vector<32x16xf32>
    %cst_140 = arith.constant dense<0.000000e+00> : vector<12x16xf32>
    %201 = tpu.matmul %197, %200, %cst_140 {dimension_numbers = #tpu.dot_dimension_numbers<[1], [0], [0], [1], [0, 0, 1, 1], [], []>} : vector<12x32xf32>, vector<32x16xf32>, vector<12x16xf32> -> vector<12x16xf32>
    %c1_141 = arith.constant 1 : index
    %c0_142 = arith.constant 0 : index
    %c0_143 = arith.constant 0 : index
    %c0_144 = arith.constant 0 : index
    %202 = vector.load %arg10[%c1_141, %c0_142, %c0_143, %c0_144] : memref<2x2x1x16xf32, #tpu.memory_space<vmem>>, vector<1x1x1x16xf32>
    %203 = vector.shape_cast %202 : vector<1x1x1x16xf32> to vector<1x16xf32>
    %204 = vector.broadcast %203 : vector<1x16xf32> to vector<12x16xf32>
    %205 = arith.addf %201, %204 : vector<12x16xf32>
    %cst_145 = arith.constant 2.500000e-01 : f32
    %206 = vector.broadcast %cst_145 : f32 to vector<12x16xf32>
    %207 = arith.mulf %205, %206 : vector<12x16xf32>
    %c1_146 = arith.constant 1 : index
    %c0_147 = arith.constant 0 : index
    %c0_148 = arith.constant 0 : index
    %c0_149 = arith.constant 0 : index
    %208 = vector.load %arg8[%c1_146, %c0_147, %c0_148, %c0_149] : memref<2x2x32x16xf32, #tpu.memory_space<vmem>>, vector<1x1x32x16xf32>
    %209 = vector.shape_cast %208 : vector<1x1x32x16xf32> to vector<32x16xf32>
    %cst_150 = arith.constant dense<0.000000e+00> : vector<12x16xf32>
    %210 = tpu.matmul %197, %209, %cst_150 {dimension_numbers = #tpu.dot_dimension_numbers<[1], [0], [0], [1], [0, 0, 1, 1], [], []>} : vector<12x32xf32>, vector<32x16xf32>, vector<12x16xf32> -> vector<12x16xf32>
    %c1_151 = arith.constant 1 : index
    %c0_152 = arith.constant 0 : index
    %c0_153 = arith.constant 0 : index
    %c0_154 = arith.constant 0 : index
    %211 = vector.load %arg11[%c1_151, %c0_152, %c0_153, %c0_154] : memref<2x2x1x16xf32, #tpu.memory_space<vmem>>, vector<1x1x1x16xf32>
    %212 = vector.shape_cast %211 : vector<1x1x1x16xf32> to vector<1x16xf32>
    %213 = vector.broadcast %212 : vector<1x16xf32> to vector<12x16xf32>
    %214 = arith.addf %210, %213 : vector<12x16xf32>
    %c1_155 = arith.constant 1 : index
    %c0_156 = arith.constant 0 : index
    %c0_157 = arith.constant 0 : index
    %c0_158 = arith.constant 0 : index
    %215 = vector.load %arg9[%c1_155, %c0_156, %c0_157, %c0_158] : memref<2x2x32x16xf32, #tpu.memory_space<vmem>>, vector<1x1x32x16xf32>
    %216 = vector.shape_cast %215 : vector<1x1x32x16xf32> to vector<32x16xf32>
    %cst_159 = arith.constant dense<0.000000e+00> : vector<12x16xf32>
    %217 = tpu.matmul %197, %216, %cst_159 {dimension_numbers = #tpu.dot_dimension_numbers<[1], [0], [0], [1], [0, 0, 1, 1], [], []>} : vector<12x32xf32>, vector<32x16xf32>, vector<12x16xf32> -> vector<12x16xf32>
    %c1_160 = arith.constant 1 : index
    %c0_161 = arith.constant 0 : index
    %c0_162 = arith.constant 0 : index
    %c0_163 = arith.constant 0 : index
    %218 = vector.load %arg12[%c1_160, %c0_161, %c0_162, %c0_163] : memref<2x2x1x16xf32, #tpu.memory_space<vmem>>, vector<1x1x1x16xf32>
    %219 = vector.shape_cast %218 : vector<1x1x1x16xf32> to vector<1x16xf32>
    %220 = vector.broadcast %219 : vector<1x16xf32> to vector<12x16xf32>
    %221 = arith.addf %217, %220 : vector<12x16xf32>
    %cst_164 = arith.constant dense<0.000000e+00> : vector<12x12xf32>
    %222 = tpu.matmul %207, %214, %cst_164 {dimension_numbers = #tpu.dot_dimension_numbers<[1], [1], [0], [0], [0, 0, 1, 0], [], []>} : vector<12x16xf32>, vector<12x16xf32>, vector<12x12xf32> -> vector<12x12xf32>
    %223 = arith.addf %222, %5 : vector<12x12xf32>
    %cst_165 = arith.constant dense<0xFF800000> : vector<12xf32>
    %224 = vector.multi_reduction <maximumf>, %223, %cst_165 [1] : vector<12x12xf32> to vector<12xf32>
    %225 = vector.shape_cast %224 : vector<12xf32> to vector<12x1xf32>
    %226 = vector.broadcast %225 : vector<12x1xf32> to vector<12x12xf32>
    %227 = arith.subf %223, %226 : vector<12x12xf32>
    %228 = math.exp %227 : vector<12x12xf32>
    %cst_166 = arith.constant dense<0.000000e+00> : vector<12xf32>
    %229 = vector.multi_reduction <add>, %228, %cst_166 [1] : vector<12x12xf32> to vector<12xf32>
    %230 = vector.shape_cast %229 : vector<12xf32> to vector<12x1xf32>
    %231 = tpu.reciprocal %230 {approx = true} : vector<12x1xf32> -> vector<12x1xf32>
    %232 = vector.broadcast %231 : vector<12x1xf32> to vector<12x12xf32>
    %233 = arith.mulf %228, %232 : vector<12x12xf32>
    %cst_167 = arith.constant dense<0.000000e+00> : vector<12x16xf32>
    %234 = tpu.matmul %233, %221, %cst_167 {dimension_numbers = #tpu.dot_dimension_numbers<[1], [0], [0], [1], [0, 0, 1, 1], [], []>} : vector<12x12xf32>, vector<12x16xf32>, vector<12x16xf32> -> vector<12x16xf32>
    %c1_168 = arith.constant 1 : index
    %c0_169 = arith.constant 0 : index
    %c0_170 = arith.constant 0 : index
    %c0_171 = arith.constant 0 : index
    %235 = vector.load %arg13[%c1_168, %c0_169, %c0_170, %c0_171] : memref<2x2x16x32xf32, #tpu.memory_space<vmem>>, vector<1x1x16x32xf32>
    %236 = vector.shape_cast %235 : vector<1x1x16x32xf32> to vector<16x32xf32>
    %cst_172 = arith.constant dense<0.000000e+00> : vector<12x32xf32>
    %237 = tpu.matmul %234, %236, %cst_172 {dimension_numbers = #tpu.dot_dimension_numbers<[1], [0], [0], [1], [0, 0, 1, 1], [], []>} : vector<12x16xf32>, vector<16x32xf32>, vector<12x32xf32> -> vector<12x32xf32>
    %238 = arith.addf %198, %237 : vector<12x32xf32>
    %c1_173 = arith.constant 1 : index
    %c1_174 = arith.constant 1 : index
    %c0_175 = arith.constant 0 : index
    %c0_176 = arith.constant 0 : index
    %239 = vector.load %arg7[%c1_173, %c1_174, %c0_175, %c0_176] : memref<2x2x32x16xf32, #tpu.memory_space<vmem>>, vector<1x1x32x16xf32>
    %240 = vector.shape_cast %239 : vector<1x1x32x16xf32> to vector<32x16xf32>
    %cst_177 = arith.constant dense<0.000000e+00> : vector<12x16xf32>
    %241 = tpu.matmul %197, %240, %cst_177 {dimension_numbers = #tpu.dot_dimension_numbers<[1], [0], [0], [1], [0, 0, 1, 1], [], []>} : vector<12x32xf32>, vector<32x16xf32>, vector<12x16xf32> -> vector<12x16xf32>
    %c1_178 = arith.constant 1 : index
    %c1_179 = arith.constant 1 : index
    %c0_180 = arith.constant 0 : index
    %c0_181 = arith.constant 0 : index
    %242 = vector.load %arg10[%c1_178, %c1_179, %c0_180, %c0_181] : memref<2x2x1x16xf32, #tpu.memory_space<vmem>>, vector<1x1x1x16xf32>
    %243 = vector.shape_cast %242 : vector<1x1x1x16xf32> to vector<1x16xf32>
    %244 = vector.broadcast %243 : vector<1x16xf32> to vector<12x16xf32>
    %245 = arith.addf %241, %244 : vector<12x16xf32>
    %cst_182 = arith.constant 2.500000e-01 : f32
    %246 = vector.broadcast %cst_182 : f32 to vector<12x16xf32>
    %247 = arith.mulf %245, %246 : vector<12x16xf32>
    %c1_183 = arith.constant 1 : index
    %c1_184 = arith.constant 1 : index
    %c0_185 = arith.constant 0 : index
    %c0_186 = arith.constant 0 : index
    %248 = vector.load %arg8[%c1_183, %c1_184, %c0_185, %c0_186] : memref<2x2x32x16xf32, #tpu.memory_space<vmem>>, vector<1x1x32x16xf32>
    %249 = vector.shape_cast %248 : vector<1x1x32x16xf32> to vector<32x16xf32>
    %cst_187 = arith.constant dense<0.000000e+00> : vector<12x16xf32>
    %250 = tpu.matmul %197, %249, %cst_187 {dimension_numbers = #tpu.dot_dimension_numbers<[1], [0], [0], [1], [0, 0, 1, 1], [], []>} : vector<12x32xf32>, vector<32x16xf32>, vector<12x16xf32> -> vector<12x16xf32>
    %c1_188 = arith.constant 1 : index
    %c1_189 = arith.constant 1 : index
    %c0_190 = arith.constant 0 : index
    %c0_191 = arith.constant 0 : index
    %251 = vector.load %arg11[%c1_188, %c1_189, %c0_190, %c0_191] : memref<2x2x1x16xf32, #tpu.memory_space<vmem>>, vector<1x1x1x16xf32>
    %252 = vector.shape_cast %251 : vector<1x1x1x16xf32> to vector<1x16xf32>
    %253 = vector.broadcast %252 : vector<1x16xf32> to vector<12x16xf32>
    %254 = arith.addf %250, %253 : vector<12x16xf32>
    %c1_192 = arith.constant 1 : index
    %c1_193 = arith.constant 1 : index
    %c0_194 = arith.constant 0 : index
    %c0_195 = arith.constant 0 : index
    %255 = vector.load %arg9[%c1_192, %c1_193, %c0_194, %c0_195] : memref<2x2x32x16xf32, #tpu.memory_space<vmem>>, vector<1x1x32x16xf32>
    %256 = vector.shape_cast %255 : vector<1x1x32x16xf32> to vector<32x16xf32>
    %cst_196 = arith.constant dense<0.000000e+00> : vector<12x16xf32>
    %257 = tpu.matmul %197, %256, %cst_196 {dimension_numbers = #tpu.dot_dimension_numbers<[1], [0], [0], [1], [0, 0, 1, 1], [], []>} : vector<12x32xf32>, vector<32x16xf32>, vector<12x16xf32> -> vector<12x16xf32>
    %c1_197 = arith.constant 1 : index
    %c1_198 = arith.constant 1 : index
    %c0_199 = arith.constant 0 : index
    %c0_200 = arith.constant 0 : index
    %258 = vector.load %arg12[%c1_197, %c1_198, %c0_199, %c0_200] : memref<2x2x1x16xf32, #tpu.memory_space<vmem>>, vector<1x1x1x16xf32>
    %259 = vector.shape_cast %258 : vector<1x1x1x16xf32> to vector<1x16xf32>
    %260 = vector.broadcast %259 : vector<1x16xf32> to vector<12x16xf32>
    %261 = arith.addf %257, %260 : vector<12x16xf32>
    %cst_201 = arith.constant dense<0.000000e+00> : vector<12x12xf32>
    %262 = tpu.matmul %247, %254, %cst_201 {dimension_numbers = #tpu.dot_dimension_numbers<[1], [1], [0], [0], [0, 0, 1, 0], [], []>} : vector<12x16xf32>, vector<12x16xf32>, vector<12x12xf32> -> vector<12x12xf32>
    %263 = arith.addf %262, %5 : vector<12x12xf32>
    %cst_202 = arith.constant dense<0xFF800000> : vector<12xf32>
    %264 = vector.multi_reduction <maximumf>, %263, %cst_202 [1] : vector<12x12xf32> to vector<12xf32>
    %265 = vector.shape_cast %264 : vector<12xf32> to vector<12x1xf32>
    %266 = vector.broadcast %265 : vector<12x1xf32> to vector<12x12xf32>
    %267 = arith.subf %263, %266 : vector<12x12xf32>
    %268 = math.exp %267 : vector<12x12xf32>
    %cst_203 = arith.constant dense<0.000000e+00> : vector<12xf32>
    %269 = vector.multi_reduction <add>, %268, %cst_203 [1] : vector<12x12xf32> to vector<12xf32>
    %270 = vector.shape_cast %269 : vector<12xf32> to vector<12x1xf32>
    %271 = tpu.reciprocal %270 {approx = true} : vector<12x1xf32> -> vector<12x1xf32>
    %272 = vector.broadcast %271 : vector<12x1xf32> to vector<12x12xf32>
    %273 = arith.mulf %268, %272 : vector<12x12xf32>
    %cst_204 = arith.constant dense<0.000000e+00> : vector<12x16xf32>
    %274 = tpu.matmul %273, %261, %cst_204 {dimension_numbers = #tpu.dot_dimension_numbers<[1], [0], [0], [1], [0, 0, 1, 1], [], []>} : vector<12x12xf32>, vector<12x16xf32>, vector<12x16xf32> -> vector<12x16xf32>
    %c1_205 = arith.constant 1 : index
    %c1_206 = arith.constant 1 : index
    %c0_207 = arith.constant 0 : index
    %c0_208 = arith.constant 0 : index
    %275 = vector.load %arg13[%c1_205, %c1_206, %c0_207, %c0_208] : memref<2x2x16x32xf32, #tpu.memory_space<vmem>>, vector<1x1x16x32xf32>
    %276 = vector.shape_cast %275 : vector<1x1x16x32xf32> to vector<16x32xf32>
    %cst_209 = arith.constant dense<0.000000e+00> : vector<12x32xf32>
    %277 = tpu.matmul %274, %276, %cst_209 {dimension_numbers = #tpu.dot_dimension_numbers<[1], [0], [0], [1], [0, 0, 1, 1], [], []>} : vector<12x16xf32>, vector<16x32xf32>, vector<12x32xf32> -> vector<12x32xf32>
    %278 = arith.addf %238, %277 : vector<12x32xf32>
    %279 = arith.addf %171, %278 : vector<12x32xf32>
    %c1_210 = arith.constant 1 : index
    %c0_211 = arith.constant 0 : index
    %c0_212 = arith.constant 0 : index
    %280 = vector.load %arg14[%c1_210, %c0_211, %c0_212] : memref<2x1x32xf32, #tpu.memory_space<vmem>>, vector<1x1x32xf32>
    %281 = vector.shape_cast %280 : vector<1x1x32xf32> to vector<1x32xf32>
    %282 = vector.broadcast %281 : vector<1x32xf32> to vector<12x32xf32>
    %283 = arith.addf %279, %282 : vector<12x32xf32>
    %c1_213 = arith.constant 1 : index
    %c0_214 = arith.constant 0 : index
    %c0_215 = arith.constant 0 : index
    %284 = vector.load %arg15[%c1_213, %c0_214, %c0_215] : memref<2x1x32xf32, #tpu.memory_space<vmem>>, vector<1x1x32xf32>
    %285 = vector.shape_cast %284 : vector<1x1x32xf32> to vector<1x32xf32>
    %c1_216 = arith.constant 1 : index
    %c0_217 = arith.constant 0 : index
    %c0_218 = arith.constant 0 : index
    %286 = vector.load %arg16[%c1_216, %c0_217, %c0_218] : memref<2x1x32xf32, #tpu.memory_space<vmem>>, vector<1x1x32xf32>
    %287 = vector.shape_cast %286 : vector<1x1x32xf32> to vector<1x32xf32>
    %cst_219 = arith.constant dense<0.000000e+00> : vector<12xf32>
    %288 = vector.multi_reduction <add>, %283, %cst_219 [1] : vector<12x32xf32> to vector<12xf32>
    %289 = vector.shape_cast %288 : vector<12xf32> to vector<12x1xf32>
    %cst_220 = arith.constant 3.200000e+01 : f32
    %290 = vector.broadcast %cst_220 : f32 to vector<12x1xf32>
    %291 = arith.divf %289, %290 : vector<12x1xf32>
    %292 = vector.broadcast %291 : vector<12x1xf32> to vector<12x32xf32>
    %293 = arith.subf %283, %292 : vector<12x32xf32>
    %294 = arith.mulf %293, %293 : vector<12x32xf32>
    %cst_221 = arith.constant dense<0.000000e+00> : vector<12xf32>
    %295 = vector.multi_reduction <add>, %294, %cst_221 [1] : vector<12x32xf32> to vector<12xf32>
    %296 = vector.shape_cast %295 : vector<12xf32> to vector<12x1xf32>
    %cst_222 = arith.constant 3.200000e+01 : f32
    %297 = vector.broadcast %cst_222 : f32 to vector<12x1xf32>
    %298 = arith.divf %296, %297 : vector<12x1xf32>
    %299 = vector.broadcast %291 : vector<12x1xf32> to vector<12x32xf32>
    %300 = arith.subf %283, %299 : vector<12x32xf32>
    %cst_223 = arith.constant 9.99999997E-7 : f32
    %301 = vector.broadcast %cst_223 : f32 to vector<12x1xf32>
    %302 = arith.addf %298, %301 : vector<12x1xf32>
    %303 = math.rsqrt %302 : vector<12x1xf32>
    %304 = vector.broadcast %303 : vector<12x1xf32> to vector<12x32xf32>
    %305 = arith.mulf %300, %304 : vector<12x32xf32>
    %306 = vector.broadcast %285 : vector<1x32xf32> to vector<12x32xf32>
    %307 = arith.mulf %305, %306 : vector<12x32xf32>
    %308 = vector.broadcast %287 : vector<1x32xf32> to vector<12x32xf32>
    %309 = arith.addf %307, %308 : vector<12x32xf32>
    %c1_224 = arith.constant 1 : index
    %c0_225 = arith.constant 0 : index
    %c0_226 = arith.constant 0 : index
    %310 = vector.load %arg17[%c1_224, %c0_225, %c0_226] : memref<2x32x128xf32, #tpu.memory_space<vmem>>, vector<1x32x128xf32>
    %311 = vector.shape_cast %310 : vector<1x32x128xf32> to vector<32x128xf32>
    %cst_227 = arith.constant dense<0.000000e+00> : vector<12x128xf32>
    %312 = tpu.matmul %309, %311, %cst_227 {dimension_numbers = #tpu.dot_dimension_numbers<[1], [0], [0], [1], [0, 0, 1, 1], [], []>} : vector<12x32xf32>, vector<32x128xf32>, vector<12x128xf32> -> vector<12x128xf32>
    %c1_228 = arith.constant 1 : index
    %c0_229 = arith.constant 0 : index
    %c0_230 = arith.constant 0 : index
    %313 = vector.load %arg18[%c1_228, %c0_229, %c0_230] : memref<2x1x128xf32, #tpu.memory_space<vmem>>, vector<1x1x128xf32>
    %314 = vector.shape_cast %313 : vector<1x1x128xf32> to vector<1x128xf32>
    %315 = vector.broadcast %314 : vector<1x128xf32> to vector<12x128xf32>
    %316 = arith.addf %312, %315 : vector<12x128xf32>
    %cst_231 = arith.constant 5.000000e-01 : f32
    %317 = vector.broadcast %cst_231 : f32 to vector<12x128xf32>
    %318 = arith.mulf %317, %316 : vector<12x128xf32>
    %cst_232 = arith.constant 4.471500e-02 : f32
    %319 = vector.broadcast %cst_232 : f32 to vector<12x128xf32>
    %320 = arith.mulf %319, %316 : vector<12x128xf32>
    %321 = arith.mulf %320, %316 : vector<12x128xf32>
    %322 = arith.mulf %321, %316 : vector<12x128xf32>
    %323 = arith.addf %316, %322 : vector<12x128xf32>
    %cst_233 = arith.constant 0.797884583 : f32
    %324 = vector.broadcast %cst_233 : f32 to vector<12x128xf32>
    %325 = arith.mulf %324, %323 : vector<12x128xf32>
    %326 = math.tanh %325 : vector<12x128xf32>
    %cst_234 = arith.constant 1.000000e+00 : f32
    %327 = vector.broadcast %cst_234 : f32 to vector<12x128xf32>
    %328 = arith.addf %327, %326 : vector<12x128xf32>
    %329 = arith.mulf %318, %328 : vector<12x128xf32>
    %c1_235 = arith.constant 1 : index
    %c0_236 = arith.constant 0 : index
    %c0_237 = arith.constant 0 : index
    %330 = vector.load %arg19[%c1_235, %c0_236, %c0_237] : memref<2x128x32xf32, #tpu.memory_space<vmem>>, vector<1x128x32xf32>
    %331 = vector.shape_cast %330 : vector<1x128x32xf32> to vector<128x32xf32>
    %cst_238 = arith.constant dense<0.000000e+00> : vector<12x32xf32>
    %332 = tpu.matmul %329, %331, %cst_238 {dimension_numbers = #tpu.dot_dimension_numbers<[1], [0], [0], [1], [0, 0, 1, 1], [], []>} : vector<12x128xf32>, vector<128x32xf32>, vector<12x32xf32> -> vector<12x32xf32>
    %c1_239 = arith.constant 1 : index
    %c0_240 = arith.constant 0 : index
    %c0_241 = arith.constant 0 : index
    %333 = vector.load %arg20[%c1_239, %c0_240, %c0_241] : memref<2x1x32xf32, #tpu.memory_space<vmem>>, vector<1x1x32xf32>
    %334 = vector.shape_cast %333 : vector<1x1x32xf32> to vector<1x32xf32>
    %335 = vector.broadcast %334 : vector<1x32xf32> to vector<12x32xf32>
    %336 = arith.addf %332, %335 : vector<12x32xf32>
    %337 = arith.addf %283, %336 : vector<12x32xf32>
    %c0_242 = arith.constant 0 : index
    %c0_243 = arith.constant 0 : index
    %338 = vector.load %arg4[%c0_242, %c0_243] : memref<2x12xf32, #tpu.memory_space<vmem>>, vector<2x12xf32>
    %cst_244 = arith.constant dense<0.000000e+00> : vector<2x32xf32>
    %339 = tpu.matmul %338, %337, %cst_244 {dimension_numbers = #tpu.dot_dimension_numbers<[1], [0], [0], [1], [0, 0, 1, 1], [], []>} : vector<2x12xf32>, vector<12x32xf32>, vector<2x32xf32> -> vector<2x32xf32>
    %c0_245 = arith.constant 0 : index
    %c0_246 = arith.constant 0 : index
    %340 = vector.load %arg21[%c0_245, %c0_246] : memref<1x32xf32, #tpu.memory_space<vmem>>, vector<1x32xf32>
    %c0_247 = arith.constant 0 : index
    %c0_248 = arith.constant 0 : index
    %341 = vector.load %arg22[%c0_247, %c0_248] : memref<1x32xf32, #tpu.memory_space<vmem>>, vector<1x32xf32>
    %cst_249 = arith.constant dense<0.000000e+00> : vector<2xf32>
    %342 = vector.multi_reduction <add>, %339, %cst_249 [1] : vector<2x32xf32> to vector<2xf32>
    %343 = vector.shape_cast %342 : vector<2xf32> to vector<2x1xf32>
    %cst_250 = arith.constant 3.200000e+01 : f32
    %344 = vector.broadcast %cst_250 : f32 to vector<2x1xf32>
    %345 = arith.divf %343, %344 : vector<2x1xf32>
    %346 = vector.broadcast %345 : vector<2x1xf32> to vector<2x32xf32>
    %347 = arith.subf %339, %346 : vector<2x32xf32>
    %348 = arith.mulf %347, %347 : vector<2x32xf32>
    %cst_251 = arith.constant dense<0.000000e+00> : vector<2xf32>
    %349 = vector.multi_reduction <add>, %348, %cst_251 [1] : vector<2x32xf32> to vector<2xf32>
    %350 = vector.shape_cast %349 : vector<2xf32> to vector<2x1xf32>
    %cst_252 = arith.constant 3.200000e+01 : f32
    %351 = vector.broadcast %cst_252 : f32 to vector<2x1xf32>
    %352 = arith.divf %350, %351 : vector<2x1xf32>
    %353 = vector.broadcast %345 : vector<2x1xf32> to vector<2x32xf32>
    %354 = arith.subf %339, %353 : vector<2x32xf32>
    %cst_253 = arith.constant 9.99999997E-7 : f32
    %355 = vector.broadcast %cst_253 : f32 to vector<2x1xf32>
    %356 = arith.addf %352, %355 : vector<2x1xf32>
    %357 = math.rsqrt %356 : vector<2x1xf32>
    %358 = vector.broadcast %357 : vector<2x1xf32> to vector<2x32xf32>
    %359 = arith.mulf %354, %358 : vector<2x32xf32>
    %360 = vector.broadcast %340 : vector<1x32xf32> to vector<2x32xf32>
    %361 = arith.mulf %359, %360 : vector<2x32xf32>
    %362 = vector.broadcast %341 : vector<1x32xf32> to vector<2x32xf32>
    %363 = arith.addf %361, %362 : vector<2x32xf32>
    %c0_254 = arith.constant 0 : index
    %c0_255 = arith.constant 0 : index
    %364 = vector.load %arg23[%c0_254, %c0_255] : memref<2x32xf32, #tpu.memory_space<vmem>>, vector<2x32xf32>
    tpu.vector_store %arg23[%c0_254, %c0_255], %363 {strides = array<i32>} : memref<2x32xf32, #tpu.memory_space<vmem>>, vector<2x32xf32>,
    return
  }
}

</mosaic_0001>

<llo_original>
// kernel: deit_backbone_forward.1
$region0: #{deit_backbone_forward.1}
  #allocation0 [shape = 'u32[]', space=smem, size = 0x4, offset = 0x4, fixed_abs, tag = 'smem constant byte address 0x4 - core index']
  #allocation1 [shape = 'u32[72,128]{1,0:T(1,128)}', space=vmem, size = 0x9000, scoped, tag = 'internal scratch']
  %s0 = inlined_call_operand.vmem [shape: f32[12,192], index: 0, kind: input, shape index: {}]
  %s1 = inlined_call_operand.vmem [shape: f32[192,32], index: 1, kind: input, shape index: {}]
  %s2 = inlined_call_operand.vmem [shape: f32[12,32], index: 2, kind: input, shape index: {}]
  %s3 = inlined_call_operand.vmem [shape: f32[12,12], index: 3, kind: input, shape index: {}]
  %s4 = inlined_call_operand.vmem [shape: f32[2,12], index: 4, kind: input, shape index: {}]
  %s5 = inlined_call_operand.vmem [shape: f32[2,1,32], index: 5, kind: input, shape index: {}]
  %s6 = inlined_call_operand.vmem [shape: f32[2,1,32], index: 6, kind: input, shape index: {}]
  %s7 = inlined_call_operand.vmem [shape: f32[2,2,32,16], index: 7, kind: input, shape index: {}]
  %s8 = inlined_call_operand.vmem [shape: f32[2,2,32,16], index: 8, kind: input, shape index: {}]
  %s9 = inlined_call_operand.vmem [shape: f32[2,2,32,16], index: 9, kind: input, shape index: {}]
  %s10 = inlined_call_operand.vmem [shape: f32[2,2,1,16], index: 10, kind: input, shape index: {}]
  %s11 = inlined_call_operand.vmem [shape: f32[2,2,1,16], index: 11, kind: input, shape index: {}]
  %s12 = inlined_call_operand.vmem [shape: f32[2,2,1,16], index: 12, kind: input, shape index: {}]
  %s13 = inlined_call_operand.vmem [shape: f32[2,2,16,32], index: 13, kind: input, shape index: {}]
  %s14 = inlined_call_operand.vmem [shape: f32[2,1,32], index: 14, kind: input, shape index: {}]
  %s15 = inlined_call_operand.vmem [shape: f32[2,1,32], index: 15, kind: input, shape index: {}]
  %s16 = inlined_call_operand.vmem [shape: f32[2,1,32], index: 16, kind: input, shape index: {}]
  %s17 = inlined_call_operand.vmem [shape: f32[2,32,128], index: 17, kind: input, shape index: {}]
  %s18 = inlined_call_operand.vmem [shape: f32[2,1,128], index: 18, kind: input, shape index: {}]
  %s19 = inlined_call_operand.vmem [shape: f32[2,128,32], index: 19, kind: input, shape index: {}]
  %s20 = inlined_call_operand.vmem [shape: f32[2,1,32], index: 20, kind: input, shape index: {}]
  %s21 = inlined_call_operand.vmem [shape: f32[1,32], index: 21, kind: input, shape index: {}]
  %s22 = inlined_call_operand.vmem [shape: f32[1,32], index: 22, kind: input, shape index: {}]
  %s23 = inlined_call_operand.hbm [shape: f32[2,32], index: 23, kind: output, shape index: {}]
  %s24 = sld [smem:[#allocation0]]
  $region102: #{deit_backbone_forward.1} parent=0
    _
  %s26 = ssub.s32 1, %s24
  %s27 = scalar_select 0, %s26, %s24
  $region1: #{deit_backbone_forward.1} parent=0
    #allocation2 [shape = 'u8[1024]{0}', space=vmem, size = 0x400, scoped, tag = 'output window, operand 0, single buffered']
    #allocation3 [shape = 's32[1]{0}', space=sflag, size = 0x4, scoped, tag = 'scoped memory for deit_backbone_forward.1']
    %28 = vsyncpa [#allocation3], 0
    // Predicated region
    $region2: #{deit_backbone_forward.1} parent=1 // pred_check
      _
    $region3: #{deit_backbone_forward.1} parent=1 // pred_check_branch
      %30 = sbr.rel (0) target = $region5
    $region4: #{deit_backbone_forward.1} parent=1 // pred_region
      _
    $region5: #{deit_backbone_forward.1} parent=1 // pred_fallthru
      _
    // Predicated region
    $region6: #{deit_backbone_forward.1} parent=1 // pred_check
      _
    $region7: #{deit_backbone_forward.1} parent=1 // pred_check_branch
      %32 = sbr.rel (0) target = $region9
    $region8: #{deit_backbone_forward.1} parent=1 // pred_region
      _
    $region9: #{deit_backbone_forward.1} parent=1 // pred_fallthru
      _
    // Predicated region
    $region10: #{deit_backbone_forward.1} parent=1 // pred_check
      _
    $region11: #{deit_backbone_forward.1} parent=1 // pred_check_branch
      %34 = sbr.rel (0) target = $region13
    $region12: #{deit_backbone_forward.1} parent=1 // pred_region
      _
    $region13: #{deit_backbone_forward.1} parent=1 // pred_fallthru
      _
    // Predicated region
    $region14: #{deit_backbone_forward.1} parent=1 // pred_check
      _
    $region15: #{deit_backbone_forward.1} parent=1 // pred_check_branch
      %36 = sbr.rel (0) target = $region17
    $region16: #{deit_backbone_forward.1} parent=1 // pred_region
      _
    $region17: #{deit_backbone_forward.1} parent=1 // pred_fallthru
      _
    // Predicated region
    $region18: #{deit_backbone_forward.1} parent=1 // pred_check
      _
    $region19: #{deit_backbone_forward.1} parent=1 // pred_check_branch
      %38 = sbr.rel (0) target = $region21
    $region20: #{deit_backbone_forward.1} parent=1 // pred_region
      _
    $region21: #{deit_backbone_forward.1} parent=1 // pred_fallthru
      _
    // Predicated region
    $region22: #{deit_backbone_forward.1} parent=1 // pred_check
      _
    $region23: #{deit_backbone_forward.1} parent=1 // pred_check_branch
      %40 = sbr.rel (0) target = $region25
    $region24: #{deit_backbone_forward.1} parent=1 // pred_region
      _
    $region25: #{deit_backbone_forward.1} parent=1 // pred_fallthru
      _
    // Predicated region
    $region26: #{deit_backbone_forward.1} parent=1 // pred_check
      _
    $region27: #{deit_backbone_forward.1} parent=1 // pred_check_branch
      %42 = sbr.rel (0) target = $region29
    $region28: #{deit_backbone_forward.1} parent=1 // pred_region
      _
    $region29: #{deit_backbone_forward.1} parent=1 // pred_fallthru
      _
    // Predicated region
    $region30: #{deit_backbone_forward.1} parent=1 // pred_check
      _
    $region31: #{deit_backbone_forward.1} parent=1 // pred_check_branch
      %44 = sbr.rel (0) target = $region33
    $region32: #{deit_backbone_forward.1} parent=1 // pred_region
      _
    $region33: #{deit_backbone_forward.1} parent=1 // pred_fallthru
      _
    // Predicated region
    $region34: #{deit_backbone_forward.1} parent=1 // pred_check
      _
    $region35: #{deit_backbone_forward.1} parent=1 // pred_check_branch
      %46 = sbr.rel (0) target = $region37
    $region36: #{deit_backbone_forward.1} parent=1 // pred_region
      _
    $region37: #{deit_backbone_forward.1} parent=1 // pred_fallthru
      _
    // Predicated region
    $region38: #{deit_backbone_forward.1} parent=1 // pred_check
      _
    $region39: #{deit_backbone_forward.1} parent=1 // pred_check_branch
      %48 = sbr.rel (0) target = $region41
    $region40: #{deit_backbone_forward.1} parent=1 // pred_region
      _
    $region41: #{deit_backbone_forward.1} parent=1 // pred_fallthru
      _
    // Predicated region
    $region42: #{deit_backbone_forward.1} parent=1 // pred_check
      _
    $region43: #{deit_backbone_forward.1} parent=1 // pred_check_branch
      %50 = sbr.rel (0) target = $region45
    $region44: #{deit_backbone_forward.1} parent=1 // pred_region
      _
    $region45: #{deit_backbone_forward.1} parent=1 // pred_fallthru
      _
    // Predicated region
    $region46: #{deit_backbone_forward.1} parent=1 // pred_check
      _
    $region47: #{deit_backbone_forward.1} parent=1 // pred_check_branch
      %52 = sbr.rel (0) target = $region49
    $region48: #{deit_backbone_forward.1} parent=1 // pred_region
      _
    $region49: #{deit_backbone_forward.1} parent=1 // pred_fallthru
      _
    // Predicated region
    $region50: #{deit_backbone_forward.1} parent=1 // pred_check
      _
    $region51: #{deit_backbone_forward.1} parent=1 // pred_check_branch
      %54 = sbr.rel (0) target = $region53
    $region52: #{deit_backbone_forward.1} parent=1 // pred_region
      _
    $region53: #{deit_backbone_forward.1} parent=1 // pred_fallthru
      _
    // Predicated region
    $region54: #{deit_backbone_forward.1} parent=1 // pred_check
      _
    $region55: #{deit_backbone_forward.1} parent=1 // pred_check_branch
      %56 = sbr.rel (0) target = $region57
    $region56: #{deit_backbone_forward.1} parent=1 // pred_region
      _
    $region57: #{deit_backbone_forward.1} parent=1 // pred_fallthru
      _
    // Predicated region
    $region58: #{deit_backbone_forward.1} parent=1 // pred_check
      _
    $region59: #{deit_backbone_forward.1} parent=1 // pred_check_branch
      %58 = sbr.rel (0) target = $region61
    $region60: #{deit_backbone_forward.1} parent=1 // pred_region
      _
    $region61: #{deit_backbone_forward.1} parent=1 // pred_fallthru
      _
    // Predicated region
    $region62: #{deit_backbone_forward.1} parent=1 // pred_check
      _
    $region63: #{deit_backbone_forward.1} parent=1 // pred_check_branch
      %60 = sbr.rel (0) target = $region65
    $region64: #{deit_backbone_forward.1} parent=1 // pred_region
      _
    $region65: #{deit_backbone_forward.1} parent=1 // pred_fallthru
      _
    // Predicated region
    $region66: #{deit_backbone_forward.1} parent=1 // pred_check
      _
    $region67: #{deit_backbone_forward.1} parent=1 // pred_check_branch
      %62 = sbr.rel (0) target = $region69
    $region68: #{deit_backbone_forward.1} parent=1 // pred_region
      _
    $region69: #{deit_backbone_forward.1} parent=1 // pred_fallthru
      _
    // Predicated region
    $region70: #{deit_backbone_forward.1} parent=1 // pred_check
      _
    $region71: #{deit_backbone_forward.1} parent=1 // pred_check_branch
      %64 = sbr.rel (0) target = $region73
    $region72: #{deit_backbone_forward.1} parent=1 // pred_region
      _
    $region73: #{deit_backbone_forward.1} parent=1 // pred_fallthru
      _
    // Predicated region
    $region74: #{deit_backbone_forward.1} parent=1 // pred_check
      _
    $region75: #{deit_backbone_forward.1} parent=1 // pred_check_branch
      %66 = sbr.rel (0) target = $region77
    $region76: #{deit_backbone_forward.1} parent=1 // pred_region
      _
    $region77: #{deit_backbone_forward.1} parent=1 // pred_fallthru
      _
    // Predicated region
    $region78: #{deit_backbone_forward.1} parent=1 // pred_check
      _
    $region79: #{deit_backbone_forward.1} parent=1 // pred_check_branch
      %68 = sbr.rel (0) target = $region81
    $region80: #{deit_backbone_forward.1} parent=1 // pred_region
      _
    $region81: #{deit_backbone_forward.1} parent=1 // pred_fallthru
      _
    // Predicated region
    $region82: #{deit_backbone_forward.1} parent=1 // pred_check
      _
    $region83: #{deit_backbone_forward.1} parent=1 // pred_check_branch
      %70 = sbr.rel (0) target = $region85
    $region84: #{deit_backbone_forward.1} parent=1 // pred_region
      _
    $region85: #{deit_backbone_forward.1} parent=1 // pred_fallthru
      _
    // Predicated region
    $region86: #{deit_backbone_forward.1} parent=1 // pred_check
      _
    $region87: #{deit_backbone_forward.1} parent=1 // pred_check_branch
      %72 = sbr.rel (0) target = $region89
    $region88: #{deit_backbone_forward.1} parent=1 // pred_region
      _
    $region89: #{deit_backbone_forward.1} parent=1 // pred_fallthru
      _
    // Predicated region
    $region90: #{deit_backbone_forward.1} parent=1 // pred_check
      _
    $region91: #{deit_backbone_forward.1} parent=1 // pred_check_branch
      %74 = sbr.rel (0) target = $region93
    $region92: #{deit_backbone_forward.1} parent=1 // pred_region
      _
    $region93: #{deit_backbone_forward.1} parent=1 // pred_fallthru
      _
    %v75 = vld [vmem:[%s0] sm:$0xff]
    %v76 = vld [vmem:[%s0 + $0x8] sm:$0xff]
    %v77 = vld [vmem:[%s0 + $0x10] sm:$0xf]
    %v78 = vld [vmem:[%s0 + $0x18] sm:$0xf]
    %v79 = vld [vmem:[%s1] sm:$0xff]
    %v80 = vld [vmem:[%s1 + $0x8] sm:$0xff]
    %v81 = vld [vmem:[%s1 + $0x10] sm:$0xff]
    %v82 = vld [vmem:[%s1 + $0x18] sm:$0xff]
    %v83 = vld [vmem:[%s1 + $0x20] sm:$0xff]
    %v84 = vld [vmem:[%s1 + $0x28] sm:$0xff]
    %v85 = vld [vmem:[%s1 + $0x30] sm:$0xff]
    %v86 = vld [vmem:[%s1 + $0x38] sm:$0xff]
    %v87 = vld [vmem:[%s1 + $0x40] sm:$0xff]
    %v88 = vld [vmem:[%s1 + $0x48] sm:$0xff]
    %v89 = vld [vmem:[%s1 + $0x50] sm:$0xff]
    %v90 = vld [vmem:[%s1 + $0x58] sm:$0xff]
    %v91 = vld [vmem:[%s1 + $0x60] sm:$0xff]
    %v92 = vld [vmem:[%s1 + $0x68] sm:$0xff]
    %v93 = vld [vmem:[%s1 + $0x70] sm:$0xff]
    %v94 = vld [vmem:[%s1 + $0x78] sm:$0xff]
    %v95 = vld [vmem:[%s1 + $0x80] sm:$0xff]
    %v96 = vld [vmem:[%s1 + $0x88] sm:$0xff]
    %v97 = vld [vmem:[%s1 + $0x90] sm:$0xff]
    %v98 = vld [vmem:[%s1 + $0x98] sm:$0xff]
    %v99 = vld [vmem:[%s1 + $0xa0] sm:$0xff]
    %v100 = vld [vmem:[%s1 + $0xa8] sm:$0xff]
    %v101 = vld [vmem:[%s1 + $0xb0] sm:$0xff]
    %v102 = vld [vmem:[%s1 + $0xb8] sm:$0xff]
    %v103 = vld [vmem:[%s2] sm:$0xff]
    %v104 = vld [vmem:[%s2 + $0x8] sm:$0xf]
    %vm105 = vcmask 523264
    %v107 = vsel %vm105, %v76, 0
    %v110 = vsel %vm105, %v78, 0
    %112 = vmatpush.msra.mxu0 %v94
    %113 = vmatpush.msra.mxu0 %v93
    %114 = vmatpush.msra.mxu0 %v92
    %115 = vmatpush.msra.mxu0 %v91
    %116 = vmatpush.msra.mxu0 %v90
    %117 = vmatpush.msra.mxu0 %v89
    %118 = vmatpush.msra.mxu0 %v88
    %119 = vmatpush.msra.mxu0 %v87
    %120 = vmatpush.msra.mxu0 %v86
    %121 = vmatpush.msra.mxu0 %v85
    %122 = vmatpush.msra.mxu0 %v84
    %123 = vmatpush.msra.mxu0 %v83
    %124 = vmatpush.msra.mxu0 %v82
    %125 = vmatpush.msra.mxu0 %v81
    %126 = vmatpush.msra.mxu0 %v80
    %127 = vmatpush.msra.mxu0 %v79
    %128 = vmatmul.f32.gmra.mxu0 %v75
    %v129 = vpop.f32.mrf.mxu0
    %v130 = vadd.f32 %v103, %v129
    %131 = vmatmul.f32.gmra.mxu0 %v77
    %v132 = vpop.f32.mrf.mxu0
    %v133 = vadd.f32 %v104, %v132
    %134 = vdwg.mxu0
    %135 = vmatpush.msra.mxu0 0.0
    %136 = vmatpush.msra.mxu0 0.0
    %137 = vmatpush.msra.mxu0 0.0
    %138 = vmatpush.msra.mxu0 0.0
    %139 = vmatpush.msra.mxu0 0.0
    %140 = vmatpush.msra.mxu0 0.0
    %141 = vmatpush.msra.mxu0 0.0
    %142 = vmatpush.msra.mxu0 0.0
    %143 = vmatpush.msra.mxu0 %v102
    %144 = vmatpush.msra.mxu0 %v101
    %145 = vmatpush.msra.mxu0 %v100
    %146 = vmatpush.msra.mxu0 %v99
    %147 = vmatpush.msra.mxu0 %v98
    %148 = vmatpush.msra.mxu0 %v97
    %149 = vmatpush.msra.mxu0 %v96
    %150 = vmatpush.msra.mxu0 %v95
    %151 = vmatmul.f32.gmra.mxu0 %v107
    %v152 = vpop.f32.mrf.mxu0
    %v153 = vadd.f32 %v130, %v152
    %154 = vmatmul.f32.gmra.mxu0 %v110
    %v155 = vpop.f32.mrf.mxu0
    %v156 = vadd.f32 %v133, %v155
    %157 = vdwg.mxu0
    %v158 = vld [vmem:[%s3] sm:$0xff]
    %v159 = vld [vmem:[%s3 + $0x8] sm:$0xf]
    %v160 = vld [vmem:[%s5] sm:$0x1]
    %v161 = vld [vmem:[%s6] sm:$0x1]
    %vm162 = vcmask 261120
    %v163 = vsel %vm162, %v153, 0.0
    %164 = vadd.xlane.f32.xlu0 %v163
    %v165 = vpop.xlane.xlu0 %164
    %vm166 = vcmask 257024
    %v167 = vsel %vm166, %v156, 0.0
    %168 = vadd.xlane.f32.xlu0 %v167
    %v169 = vpop.xlane.xlu0 %168
    %v170 = vrcp.pop 32.0
    %v171 = vmul.f32 32.0, %v170
    %v172 = vsub.f32 1.0, %v171
    %v173 = vmul.f32 %v170, %v172
    %v174 = vadd.f32 %v170, %v173
    %vm175 = vweird.f32 %v170
    %v176 = vsel %vm175, %v170, %v174
    %v177 = vmul.f32 %v165, %v176
    %v178 = vmul.f32 %v169, %v176
    %v179 = vsub.f32 %v153, %v177
    %v180 = vsub.f32 %v156, %v178
    %v181 = vmul.f32 %v179, %v179
    %v182 = vmul.f32 %v180, %v180
    %v183 = vsel %vm162, %v181, 0.0
    %184 = vadd.xlane.f32.xlu0 %v183
    %v185 = vpop.xlane.xlu0 %184
    %v186 = vsel %vm166, %v182, 0.0
    %187 = vadd.xlane.f32.xlu0 %v186
    %v188 = vpop.xlane.xlu0 %187
    %v189 = vmul.f32 %v185, %v176
    %v190 = vmul.f32 %v188, %v176
    %v191 = vadd.f32 %v189, 1e-06
    %v192 = vadd.f32 %v190, 1e-06
    %v193 = vrsqrt.pop %v191
    %v194 = vmul.f32 %v193, %v191
    %v195 = vmul.f32 %v194, %v193
    %v196 = vmul.f32 0.5, %v195
    %v197 = vsub.f32 1.5, %v196
    %v198 = vmul.f32 %v193, %v197
    %vm199 = vweird.f32 %v191
    %vm200 = vweird.f32 %v193
    %vm201 = vmor %vm199, %vm200
    %v202 = vsel %vm201, %v193, %v198
    %v203 = vrsqrt.pop %v192
    %v204 = vmul.f32 %v203, %v192
    %v205 = vmul.f32 %v204, %v203
    %v206 = vmul.f32 0.5, %v205
    %v207 = vsub.f32 1.5, %v206
    %v208 = vmul.f32 %v203, %v207
    %vm209 = vweird.f32 %v192
    %vm210 = vweird.f32 %v203
    %vm211 = vmor %vm209, %vm210
    %v212 = vsel %vm211, %v203, %v208
    %v213 = vmul.f32 %v179, %v202
    %v214 = vmul.f32 %v180, %v212
    %v216 = vperm.slane %v160, 0
    %v218 = vmul.f32 %v213, %v216
    %v219 = vmul.f32 %v214, %v216
    %v221 = vperm.slane %v161, 0
    %v223 = vadd.f32 %v218, %v221
    %v224 = vadd.f32 %v219, %v221
    %v225 = vld [vmem:[%s7] sm:$0xff]
    %v226 = vld [vmem:[%s7 + $0x8] sm:$0xff]
    %v227 = vld [vmem:[%s7 + $0x10] sm:$0xff]
    %v228 = vld [vmem:[%s7 + $0x18] sm:$0xff]
    %v229 = vld [vmem:[%s10] sm:$0x1]
    %v231 = vperm.slane %v229, 0
    %v234 = vsel %vm162, %v223, 0
    %v237 = vsel %vm162, %v224, 0
    %239 = vmatpush.msra.mxu0 0.0
    %240 = vmatpush.msra.mxu0 0.0
    %241 = vmatpush.msra.mxu0 0.0
    %242 = vmatpush.msra.mxu0 0.0
    %243 = vmatpush.msra.mxu0 0.0
    %244 = vmatpush.msra.mxu0 0.0
    %245 = vmatpush.msra.mxu0 0.0
    %246 = vmatpush.msra.mxu0 0.0
    %247 = vmatpush.msra.mxu0 0.0
    %248 = vmatpush.msra.mxu0 0.0
    %249 = vmatpush.msra.mxu0 0.0
    %250 = vmatpush.msra.mxu0 0.0
    %251 = vmatpush.msra.mxu0 %v228
    %252 = vmatpush.msra.mxu0 %v227
    %253 = vmatpush.msra.mxu0 %v226
    %254 = vmatpush.msra.mxu0 %v225
    %255 = vmatmul.f32.gmra.mxu0 %v234
    %v256 = vpop.f32.mrf.mxu0
    %v257 = vadd.f32 %v231, %v256
    %258 = vmatmul.f32.gmra.mxu0 %v237
    %v259 = vpop.f32.mrf.mxu0
    %v260 = vadd.f32 %v231, %v259
    %261 = vdwg.mxu0
    %v262 = vmul.f32 %v257, 0.25
    %v263 = vmul.f32 %v260, 0.25
    %v264 = vld [vmem:[%s8] sm:$0xff]
    %v265 = vld [vmem:[%s8 + $0x8] sm:$0xff]
    %v266 = vld [vmem:[%s8 + $0x10] sm:$0xff]
    %v267 = vld [vmem:[%s8 + $0x18] sm:$0xff]
    %v268 = vld [vmem:[%s11] sm:$0x1]
    %v270 = vperm.slane %v268, 0
    %272 = vmatpush.msra.mxu0 0.0
    %273 = vmatpush.msra.mxu0 0.0
    %274 = vmatpush.msra.mxu0 0.0
    %275 = vmatpush.msra.mxu0 0.0
    %276 = vmatpush.msra.mxu0 0.0
    %277 = vmatpush.msra.mxu0 0.0
    %278 = vmatpush.msra.mxu0 0.0
    %279 = vmatpush.msra.mxu0 0.0
    %280 = vmatpush.msra.mxu0 0.0
    %281 = vmatpush.msra.mxu0 0.0
    %282 = vmatpush.msra.mxu0 0.0
    %283 = vmatpush.msra.mxu0 0.0
    %284 = vmatpush.msra.mxu0 %v267
    %285 = vmatpush.msra.mxu0 %v266
    %286 = vmatpush.msra.mxu0 %v265
    %287 = vmatpush.msra.mxu0 %v264
    %288 = vmatmul.f32.gmra.mxu0 %v234
    %v289 = vpop.f32.mrf.mxu0
    %v290 = vadd.f32 %v270, %v289
    %291 = vmatmul.f32.gmra.mxu0 %v237
    %v292 = vpop.f32.mrf.mxu0
    %v293 = vadd.f32 %v270, %v292
    %294 = vdwg.mxu0
    %v295 = vld [vmem:[%s9] sm:$0xff]
    %v296 = vld [vmem:[%s9 + $0x8] sm:$0xff]
    %v297 = vld [vmem:[%s9 + $0x10] sm:$0xff]
    %v298 = vld [vmem:[%s9 + $0x18] sm:$0xff]
    %v299 = vld [vmem:[%s12] sm:$0x1]
    %v301 = vperm.slane %v299, 0
    %303 = vmatpush.msra.mxu0 0.0
    %304 = vmatpush.msra.mxu0 0.0
    %305 = vmatpush.msra.mxu0 0.0
    %306 = vmatpush.msra.mxu0 0.0
    %307 = vmatpush.msra.mxu0 0.0
    %308 = vmatpush.msra.mxu0 0.0
    %309 = vmatpush.msra.mxu0 0.0
    %310 = vmatpush.msra.mxu0 0.0
    %311 = vmatpush.msra.mxu0 0.0
    %312 = vmatpush.msra.mxu0 0.0
    %313 = vmatpush.msra.mxu0 0.0
    %314 = vmatpush.msra.mxu0 0.0
    %315 = vmatpush.msra.mxu0 %v298
    %316 = vmatpush.msra.mxu0 %v297
    %317 = vmatpush.msra.mxu0 %v296
    %318 = vmatpush.msra.mxu0 %v295
    %319 = vmatmul.f32.gmra.mxu0 %v234
    %v320 = vpop.f32.mrf.mxu0
    %v321 = vadd.f32 %v301, %v320
    %322 = vmatmul.f32.gmra.mxu0 %v237
    %v323 = vpop.f32.mrf.mxu0
    %v324 = vadd.f32 %v301, %v323
    %325 = vdwg.mxu0
    %vm326 = vcmask 130048
    %v328 = vsel %vm326, %v262, 0
    %v331 = vsel %vm326, %v263, 0
    %v334 = vsel %vm326, %v290, 0
    %v337 = vsel %vm326, %v293, 0
    %339 = vmatpush.xpose.msra.mxu0 0.0
    %340 = vmatpush.xpose.msra.mxu0 0.0
    %341 = vmatpush.xpose.msra.mxu0 0.0
    %342 = vmatpush.xpose.msra.mxu0 0.0
    %343 = vmatpush.xpose.msra.mxu0 0.0
    %344 = vmatpush.xpose.msra.mxu0 0.0
    %345 = vmatpush.xpose.msra.mxu0 0.0
    %346 = vmatpush.xpose.msra.mxu0 0.0
    %347 = vmatpush.xpose.msra.mxu0 0.0
    %348 = vmatpush.xpose.msra.mxu0 0.0
    %349 = vmatpush.xpose.msra.mxu0 0.0
    %350 = vmatpush.xpose.msra.mxu0 0.0
    %351 = vmatpush.xpose.msra.mxu0 0.0
    %352 = vmatpush.xpose.msra.mxu0 0.0
    %353 = vmatpush.xpose.msra.mxu0 %v337
    %354 = vmatpush.xpose.msra.mxu0 %v334
    %355 = vmatmul.f32.gmra.mxu0 %v328
    %v356 = vpop.f32.mrf.mxu0
    %v357 = vadd.f32 %v158, %v356
    %358 = vmatmul.f32.gmra.mxu0 %v331
    %v359 = vpop.f32.mrf.mxu0
    %v360 = vadd.f32 %v159, %v359
    %361 = vdwg.mxu0
    %vm362 = vcmask 97280
    %v363 = vsel %vm362, %v357, -inf
    %364 = vmax.xlane.f32.xlu0 %v363
    %v365 = vpop.xlane.xlu0 %364
    %vm366 = vcmask 93184
    %v367 = vsel %vm366, %v360, -inf
    %368 = vmax.xlane.f32.xlu0 %v367
    %v369 = vpop.xlane.xlu0 %368
    %v370 = vsub.f32 %v357, %v365
    %v371 = vsub.f32 %v360, %v369
    %v372 = vmul.f32 %v370, 1.442695
    %v373 = vpow.pop %v372
    %v374 = vmul.f32 %v371, 1.442695
    %v375 = vpow.pop %v374
    %v376 = vsel %vm362, %v373, 0.0
    %377 = vadd.xlane.f32.xlu0 %v376
    %v378 = vpop.xlane.xlu0 %377
    %v379 = vsel %vm366, %v375, 0.0
    %380 = vadd.xlane.f32.xlu0 %v379
    %v381 = vpop.xlane.xlu0 %380
    %v382 = vrcp.pop %v378
    %v383 = vrcp.pop %v381
    %v384 = vmul.f32 %v373, %v382
    %v385 = vmul.f32 %v375, %v383
    %v387 = vsel %vm362, %v384, 0
    %v390 = vsel %vm362, %v385, 0
    %vm392 = vcmask 1043456
    %v394 = vsel %vm392, %v324, 0
    %396 = vmatpush.msra.mxu0 0.0
    %397 = vmatpush.msra.mxu0 0.0
    %398 = vmatpush.msra.mxu0 0.0
    %399 = vmatpush.msra.mxu0 0.0
    %400 = vmatpush.msra.mxu0 0.0
    %401 = vmatpush.msra.mxu0 0.0
    %402 = vmatpush.msra.mxu0 0.0
    %403 = vmatpush.msra.mxu0 0.0
    %404 = vmatpush.msra.mxu0 0.0
    %405 = vmatpush.msra.mxu0 0.0
    %406 = vmatpush.msra.mxu0 0.0
    %407 = vmatpush.msra.mxu0 0.0
    %408 = vmatpush.msra.mxu0 0.0
    %409 = vmatpush.msra.mxu0 0.0
    %410 = vmatpush.msra.mxu0 %v394
    %411 = vmatpush.msra.mxu0 %v321
    %412 = vmatmul.f32.gmra.mxu0 %v387
    %v413 = vpop.f32.mrf.mxu0
    %v414 = vadd.f32 0.0, %v413
    %415 = vmatmul.f32.gmra.mxu0 %v390
    %v416 = vpop.f32.mrf.mxu0
    %v417 = vadd.f32 0.0, %v416
    %418 = vdwg.mxu0
    %v419 = vld [vmem:[%s13] sm:$0xff]
    %v420 = vld [vmem:[%s13 + $0x8] sm:$0xff]
    %s421 = scalar_lea.vmem %s7, 32
    %v422 = vld [vmem:[%s421] sm:$0xff]
    %v423 = vld [vmem:[%s421 + $0x8] sm:$0xff]
    %v424 = vld [vmem:[%s421 + $0x10] sm:$0xff]
    %v425 = vld [vmem:[%s421 + $0x18] sm:$0xff]
    %s426 = scalar_lea.vmem %s10, 1
    %v427 = vld [vmem:[%s426] sm:$0x1]
    %v429 = vperm.slane %v427, 0
    %431 = vmatpush.msra.mxu0 0.0
    %432 = vmatpush.msra.mxu0 0.0
    %433 = vmatpush.msra.mxu0 0.0
    %434 = vmatpush.msra.mxu0 0.0
    %435 = vmatpush.msra.mxu0 0.0
    %436 = vmatpush.msra.mxu0 0.0
    %437 = vmatpush.msra.mxu0 0.0
    %438 = vmatpush.msra.mxu0 0.0
    %439 = vmatpush.msra.mxu0 0.0
    %440 = vmatpush.msra.mxu0 0.0
    %441 = vmatpush.msra.mxu0 0.0
    %442 = vmatpush.msra.mxu0 0.0
    %443 = vmatpush.msra.mxu0 %v425
    %444 = vmatpush.msra.mxu0 %v424
    %445 = vmatpush.msra.mxu0 %v423
    %446 = vmatpush.msra.mxu0 %v422
    %447 = vmatmul.f32.gmra.mxu0 %v234
    %v448 = vpop.f32.mrf.mxu0
    %v449 = vadd.f32 %v429, %v448
    %450 = vmatmul.f32.gmra.mxu0 %v237
    %v451 = vpop.f32.mrf.mxu0
    %v452 = vadd.f32 %v429, %v451
    %453 = vdwg.mxu0
    %v454 = vmul.f32 %v449, 0.25
    %v455 = vmul.f32 %v452, 0.25
    %s456 = scalar_lea.vmem %s8, 32
    %v457 = vld [vmem:[%s456] sm:$0xff]
    %v458 = vld [vmem:[%s456 + $0x8] sm:$0xff]
    %v459 = vld [vmem:[%s456 + $0x10] sm:$0xff]
    %v460 = vld [vmem:[%s456 + $0x18] sm:$0xff]
    %s461 = scalar_lea.vmem %s11, 1
    %v462 = vld [vmem:[%s461] sm:$0x1]
    %v464 = vperm.slane %v462, 0
    %466 = vmatpush.msra.mxu0 0.0
    %467 = vmatpush.msra.mxu0 0.0
    %468 = vmatpush.msra.mxu0 0.0
    %469 = vmatpush.msra.mxu0 0.0
    %470 = vmatpush.msra.mxu0 0.0
    %471 = vmatpush.msra.mxu0 0.0
    %472 = vmatpush.msra.mxu0 0.0
    %473 = vmatpush.msra.mxu0 0.0
    %474 = vmatpush.msra.mxu0 0.0
    %475 = vmatpush.msra.mxu0 0.0
    %476 = vmatpush.msra.mxu0 0.0
    %477 = vmatpush.msra.mxu0 0.0
    %478 = vmatpush.msra.mxu0 %v460
    %479 = vmatpush.msra.mxu0 %v459
    %480 = vmatpush.msra.mxu0 %v458
    %481 = vmatpush.msra.mxu0 %v457
    %482 = vmatmul.f32.gmra.mxu0 %v234
    %v483 = vpop.f32.mrf.mxu0
    %v484 = vadd.f32 %v464, %v483
    %485 = vmatmul.f32.gmra.mxu0 %v237
    %v486 = vpop.f32.mrf.mxu0
    %v487 = vadd.f32 %v464, %v486
    %488 = vdwg.mxu0
    %s489 = scalar_lea.vmem %s9, 32
    %v490 = vld [vmem:[%s489] sm:$0xff]
    %v491 = vld [vmem:[%s489 + $0x8] sm:$0xff]
    %v492 = vld [vmem:[%s489 + $0x10] sm:$0xff]
    %v493 = vld [vmem:[%s489 + $0x18] sm:$0xff]
    %s494 = scalar_lea.vmem %s12, 1
    %v495 = vld [vmem:[%s494] sm:$0x1]
    %v497 = vperm.slane %v495, 0
    %499 = vmatpush.msra.mxu0 0.0
    %500 = vmatpush.msra.mxu0 0.0
    %501 = vmatpush.msra.mxu0 0.0
    %502 = vmatpush.msra.mxu0 0.0
    %503 = vmatpush.msra.mxu0 0.0
    %504 = vmatpush.msra.mxu0 0.0
    %505 = vmatpush.msra.mxu0 0.0
    %506 = vmatpush.msra.mxu0 0.0
    %507 = vmatpush.msra.mxu0 0.0
    %508 = vmatpush.msra.mxu0 0.0
    %509 = vmatpush.msra.mxu0 0.0
    %510 = vmatpush.msra.mxu0 0.0
    %511 = vmatpush.msra.mxu0 %v493
    %512 = vmatpush.msra.mxu0 %v492
    %513 = vmatpush.msra.mxu0 %v491
    %514 = vmatpush.msra.mxu0 %v490
    %515 = vmatmul.f32.gmra.mxu0 %v234
    %v516 = vpop.f32.mrf.mxu0
    %v517 = vadd.f32 %v497, %v516
    %518 = vmatmul.f32.gmra.mxu0 %v237
    %v519 = vpop.f32.mrf.mxu0
    %v520 = vadd.f32 %v497, %v519
    %521 = vdwg.mxu0
    %v523 = vsel %vm326, %v454, 0
    %v526 = vsel %vm326, %v455, 0
    %v529 = vsel %vm326, %v484, 0
    %v532 = vsel %vm326, %v487, 0
    %534 = vmatpush.xpose.msra.mxu0 0.0
    %535 = vmatpush.xpose.msra.mxu0 0.0
    %536 = vmatpush.xpose.msra.mxu0 0.0
    %537 = vmatpush.xpose.msra.mxu0 0.0
    %538 = vmatpush.xpose.msra.mxu0 0.0
    %539 = vmatpush.xpose.msra.mxu0 0.0
    %540 = vmatpush.xpose.msra.mxu0 0.0
    %541 = vmatpush.xpose.msra.mxu0 0.0
    %542 = vmatpush.xpose.msra.mxu0 0.0
    %543 = vmatpush.xpose.msra.mxu0 0.0
    %544 = vmatpush.xpose.msra.mxu0 0.0
    %545 = vmatpush.xpose.msra.mxu0 0.0
    %546 = vmatpush.xpose.msra.mxu0 0.0
    %547 = vmatpush.xpose.msra.mxu0 0.0
    %548 = vmatpush.xpose.msra.mxu0 %v532
    %549 = vmatpush.xpose.msra.mxu0 %v529
    %550 = vmatmul.f32.gmra.mxu0 %v523
    %v551 = vpop.f32.mrf.mxu0
    %v552 = vadd.f32 %v158, %v551
    %553 = vmatmul.f32.gmra.mxu0 %v526
    %v554 = vpop.f32.mrf.mxu0
    %v555 = vadd.f32 %v159, %v554
    %556 = vdwg.mxu0
    %v557 = vsel %vm362, %v552, -inf
    %558 = vmax.xlane.f32.xlu0 %v557
    %v559 = vpop.xlane.xlu0 %558
    %v560 = vsel %vm366, %v555, -inf
    %561 = vmax.xlane.f32.xlu0 %v560
    %v562 = vpop.xlane.xlu0 %561
    %v563 = vsub.f32 %v552, %v559
    %v564 = vsub.f32 %v555, %v562
    %v565 = vmul.f32 %v563, 1.442695
    %v566 = vpow.pop %v565
    %v567 = vmul.f32 %v564, 1.442695
    %v568 = vpow.pop %v567
    %v569 = vsel %vm362, %v566, 0.0
    %570 = vadd.xlane.f32.xlu0 %v569
    %v571 = vpop.xlane.xlu0 %570
    %v572 = vsel %vm366, %v568, 0.0
    %573 = vadd.xlane.f32.xlu0 %v572
    %v574 = vpop.xlane.xlu0 %573
    %v575 = vrcp.pop %v571
    %v576 = vrcp.pop %v574
    %v577 = vmul.f32 %v566, %v575
    %v578 = vmul.f32 %v568, %v576
    %v580 = vsel %vm362, %v577, 0
    %v583 = vsel %vm362, %v578, 0
    %v586 = vsel %vm392, %v520, 0
    %588 = vmatpush.msra.mxu0 0.0
    %589 = vmatpush.msra.mxu0 0.0
    %590 = vmatpush.msra.mxu0 0.0
    %591 = vmatpush.msra.mxu0 0.0
    %592 = vmatpush.msra.mxu0 0.0
    %593 = vmatpush.msra.mxu0 0.0
    %594 = vmatpush.msra.mxu0 0.0
    %595 = vmatpush.msra.mxu0 0.0
    %596 = vmatpush.msra.mxu0 0.0
    %597 = vmatpush.msra.mxu0 0.0
    %598 = vmatpush.msra.mxu0 0.0
    %599 = vmatpush.msra.mxu0 0.0
    %600 = vmatpush.msra.mxu0 0.0
    %601 = vmatpush.msra.mxu0 0.0
    %602 = vmatpush.msra.mxu0 %v586
    %603 = vmatpush.msra.mxu0 %v517
    %604 = vmatmul.f32.gmra.mxu0 %v580
    %v605 = vpop.f32.mrf.mxu0
    %v606 = vadd.f32 0.0, %v605
    %607 = vmatmul.f32.gmra.mxu0 %v583
    %v608 = vpop.f32.mrf.mxu0
    %v609 = vadd.f32 0.0, %v608
    %610 = vdwg.mxu0
    %s611 = scalar_lea.vmem %s13, 16
    %v612 = vld [vmem:[%s611] sm:$0xff]
    %v613 = vld [vmem:[%s611 + $0x8] sm:$0xff]
    %v615 = vsel %vm326, %v606, 0
    %v618 = vsel %vm326, %v609, 0
    %620 = vmatpush.msra.mxu0 0.0
    %621 = vmatpush.msra.mxu0 0.0
    %622 = vmatpush.msra.mxu0 0.0
    %623 = vmatpush.msra.mxu0 0.0
    %624 = vmatpush.msra.mxu0 0.0
    %625 = vmatpush.msra.mxu0 0.0
    %626 = vmatpush.msra.mxu0 0.0
    %627 = vmatpush.msra.mxu0 0.0
    %628 = vmatpush.msra.mxu0 0.0
    %629 = vmatpush.msra.mxu0 0.0
    %630 = vmatpush.msra.mxu0 0.0
    %631 = vmatpush.msra.mxu0 0.0
    %632 = vmatpush.msra.mxu0 0.0
    %633 = vmatpush.msra.mxu0 0.0
    %634 = vmatpush.msra.mxu0 %v613
    %635 = vmatpush.msra.mxu0 %v612
    %636 = vmatmul.f32.gmra.mxu0 %v615
    %v637 = vpop.f32.mrf.mxu0
    %v638 = vadd.f32 0.0, %v637
    %639 = vmatmul.f32.gmra.mxu0 %v618
    %v640 = vpop.f32.mrf.mxu0
    %v641 = vadd.f32 0.0, %v640
    %642 = vdwg.mxu0
    %v644 = vsel %vm326, %v414, 0
    %v647 = vsel %vm326, %v417, 0
    %649 = vmatpush.msra.mxu0 0.0
    %650 = vmatpush.msra.mxu0 0.0
    %651 = vmatpush.msra.mxu0 0.0
    %652 = vmatpush.msra.mxu0 0.0
    %653 = vmatpush.msra.mxu0 0.0
    %654 = vmatpush.msra.mxu0 0.0
    %655 = vmatpush.msra.mxu0 0.0
    %656 = vmatpush.msra.mxu0 0.0
    %657 = vmatpush.msra.mxu0 0.0
    %658 = vmatpush.msra.mxu0 0.0
    %659 = vmatpush.msra.mxu0 0.0
    %660 = vmatpush.msra.mxu0 0.0
    %661 = vmatpush.msra.mxu0 0.0
    %662 = vmatpush.msra.mxu0 0.0
    %663 = vmatpush.msra.mxu0 %v420
    %664 = vmatpush.msra.mxu0 %v419
    %665 = vmatmul.f32.gmra.mxu0 %v644
    %v666 = vpop.f32.mrf.mxu0
    %v667 = vadd.f32 %v638, %v666
    %668 = vmatmul.f32.gmra.mxu0 %v647
    %v669 = vpop.f32.mrf.mxu0
    %v670 = vadd.f32 %v641, %v669
    %671 = vdwg.mxu0
    %v672 = vadd.f32 %v153, %v667
    %v673 = vadd.f32 %v156, %v670
    %v674 = vld [vmem:[%s14] sm:$0x1]
    %v676 = vperm.slane %v674, 0
    %v678 = vadd.f32 %v672, %v676
    %v679 = vadd.f32 %v673, %v676
    %v680 = vld [vmem:[%s15] sm:$0x1]
    %v681 = vld [vmem:[%s16] sm:$0x1]
    %v682 = vsel %vm162, %v678, 0.0
    %683 = vadd.xlane.f32.xlu0 %v682
    %v684 = vpop.xlane.xlu0 %683
    %v685 = vsel %vm166, %v679, 0.0
    %686 = vadd.xlane.f32.xlu0 %v685
    %v687 = vpop.xlane.xlu0 %686
    %v688 = vmul.f32 %v684, %v176
    %v689 = vmul.f32 %v687, %v176
    %v690 = vsub.f32 %v678, %v688
    %v691 = vsub.f32 %v679, %v689
    %v692 = vmul.f32 %v690, %v690
    %v693 = vmul.f32 %v691, %v691
    %v694 = vsel %vm162, %v692, 0.0
    %695 = vadd.xlane.f32.xlu0 %v694
    %v696 = vpop.xlane.xlu0 %695
    %v697 = vsel %vm166, %v693, 0.0
    %698 = vadd.xlane.f32.xlu0 %v697
    %v699 = vpop.xlane.xlu0 %698
    %v700 = vmul.f32 %v696, %v176
    %v701 = vmul.f32 %v699, %v176
    %v702 = vadd.f32 %v700, 1e-06
    %v703 = vadd.f32 %v701, 1e-06
    %v704 = vrsqrt.pop %v702
    %v705 = vmul.f32 %v704, %v702
    %v706 = vmul.f32 %v705, %v704
    %v707 = vmul.f32 0.5, %v706
    %v708 = vsub.f32 1.5, %v707
    %v709 = vmul.f32 %v704, %v708
    %vm710 = vweird.f32 %v702
    %vm711 = vweird.f32 %v704
    %vm712 = vmor %vm710, %vm711
    %v713 = vsel %vm712, %v704, %v709
    %v714 = vrsqrt.pop %v703
    %v715 = vmul.f32 %v714, %v703
    %v716 = vmul.f32 %v715, %v714
    %v717 = vmul.f32 0.5, %v716
    %v718 = vsub.f32 1.5, %v717
    %v719 = vmul.f32 %v714, %v718
    %vm720 = vweird.f32 %v703
    %vm721 = vweird.f32 %v714
    %vm722 = vmor %vm720, %vm721
    %v723 = vsel %vm722, %v714, %v719
    %v724 = vmul.f32 %v690, %v713
    %v725 = vmul.f32 %v691, %v723
    %v727 = vperm.slane %v680, 0
    %v729 = vmul.f32 %v724, %v727
    %v730 = vmul.f32 %v725, %v727
    %v732 = vperm.slane %v681, 0
    %v734 = vadd.f32 %v729, %v732
    %v735 = vadd.f32 %v730, %v732
    %v736 = vld [vmem:[%s17] sm:$0xff]
    %v737 = vld [vmem:[%s17 + $0x8] sm:$0xff]
    %v738 = vld [vmem:[%s17 + $0x10] sm:$0xff]
    %v739 = vld [vmem:[%s17 + $0x18] sm:$0xff]
    %v740 = vld [vmem:[%s18] sm:$0x1]
    %v742 = vperm.slane %v740, 0
    %v745 = vsel %vm162, %v734, 0
    %v748 = vsel %vm162, %v735, 0
    %750 = vmatpush.msra.mxu0 0.0
    %751 = vmatpush.msra.mxu0 0.0
    %752 = vmatpush.msra.mxu0 0.0
    %753 = vmatpush.msra.mxu0 0.0
    %754 = vmatpush.msra.mxu0 0.0
    %755 = vmatpush.msra.mxu0 0.0
    %756 = vmatpush.msra.mxu0 0.0
    %757 = vmatpush.msra.mxu0 0.0
    %758 = vmatpush.msra.mxu0 0.0
    %759 = vmatpush.msra.mxu0 0.0
    %760 = vmatpush.msra.mxu0 0.0
    %761 = vmatpush.msra.mxu0 0.0
    %762 = vmatpush.msra.mxu0 %v739
    %763 = vmatpush.msra.mxu0 %v738
    %764 = vmatpush.msra.mxu0 %v737
    %765 = vmatpush.msra.mxu0 %v736
    %766 = vmatmul.f32.gmra.mxu0 %v745
    %v767 = vpop.f32.mrf.mxu0
    %v768 = vadd.f32 %v742, %v767
    %769 = vmatmul.f32.gmra.mxu0 %v748
    %v770 = vpop.f32.mrf.mxu0
    %v771 = vadd.f32 %v742, %v770
    %772 = vdwg.mxu0
    %v773 = vmul.f32 %v768, 0.5
    %v774 = vmul.f32 %v771, 0.5
    %v775 = vmul.f32 %v768, 0.044715
    %v776 = vmul.f32 %v771, 0.044715
    %v777 = vmul.f32 %v775, %v768
    %v778 = vmul.f32 %v776, %v771
    %v779 = vmul.f32 %v777, %v768
    %v780 = vmul.f32 %v778, %v771
    %v781 = vadd.f32 %v768, %v779
    %v782 = vadd.f32 %v771, %v780
    %v783 = vmul.f32 %v781, 0.7978846
    %v784 = vmul.f32 %v782, 0.7978846
    %v785 = vtanh.pop %v783
    %v786 = vtanh.pop %v784
    %v787 = vadd.f32 %v785, 1.0
    %v788 = vadd.f32 %v786, 1.0
    %v789 = vmul.f32 %v773, %v787
    %v790 = vmul.f32 %v774, %v788
    %v791 = vld [vmem:[%s19] sm:$0xff]
    %v792 = vld [vmem:[%s19 + $0x8] sm:$0xff]
    %v793 = vld [vmem:[%s19 + $0x10] sm:$0xff]
    %v794 = vld [vmem:[%s19 + $0x18] sm:$0xff]
    %v795 = vld [vmem:[%s19 + $0x20] sm:$0xff]
    %v796 = vld [vmem:[%s19 + $0x28] sm:$0xff]
    %v797 = vld [vmem:[%s19 + $0x30] sm:$0xff]
    %v798 = vld [vmem:[%s19 + $0x38] sm:$0xff]
    %v799 = vld [vmem:[%s19 + $0x40] sm:$0xff]
    %v800 = vld [vmem:[%s19 + $0x48] sm:$0xff]
    %v801 = vld [vmem:[%s19 + $0x50] sm:$0xff]
    %v802 = vld [vmem:[%s19 + $0x58] sm:$0xff]
    %v803 = vld [vmem:[%s19 + $0x60] sm:$0xff]
    %v804 = vld [vmem:[%s19 + $0x68] sm:$0xff]
    %v805 = vld [vmem:[%s19 + $0x70] sm:$0xff]
    %v806 = vld [vmem:[%s19 + $0x78] sm:$0xff]
    %v807 = vld [vmem:[%s20] sm:$0x1]
    %v809 = vperm.slane %v807, 0
    %811 = vmatpush.msra.mxu0 %v806
    %812 = vmatpush.msra.mxu0 %v805
    %813 = vmatpush.msra.mxu0 %v804
    %814 = vmatpush.msra.mxu0 %v803
    %815 = vmatpush.msra.mxu0 %v802
    %816 = vmatpush.msra.mxu0 %v801
    %817 = vmatpush.msra.mxu0 %v800
    %818 = vmatpush.msra.mxu0 %v799
    %819 = vmatpush.msra.mxu0 %v798
    %820 = vmatpush.msra.mxu0 %v797
    %821 = vmatpush.msra.mxu0 %v796
    %822 = vmatpush.msra.mxu0 %v795
    %823 = vmatpush.msra.mxu0 %v794
    %824 = vmatpush.msra.mxu0 %v793
    %825 = vmatpush.msra.mxu0 %v792
    %826 = vmatpush.msra.mxu0 %v791
    %827 = vmatmul.f32.gmra.mxu0 %v789
    %v828 = vpop.f32.mrf.mxu0
    %v829 = vadd.f32 %v809, %v828
    %830 = vmatmul.f32.gmra.mxu0 %v790
    %v831 = vpop.f32.mrf.mxu0
    %v832 = vadd.f32 %v809, %v831
    %833 = vdwg.mxu0
    %v834 = vadd.f32 %v678, %v829
    %v835 = vadd.f32 %v679, %v832
    %s836 = scalar_lea.vmem %s5, 1
    %v837 = vld [vmem:[%s836] sm:$0x1]
    %s838 = scalar_lea.vmem %s6, 1
    %v839 = vld [vmem:[%s838] sm:$0x1]
    %v840 = vsel %vm162, %v834, 0.0
    %841 = vadd.xlane.f32.xlu0 %v840
    %v842 = vpop.xlane.xlu0 %841
    %v843 = vsel %vm166, %v835, 0.0
    %844 = vadd.xlane.f32.xlu0 %v843
    %v845 = vpop.xlane.xlu0 %844
    %v846 = vmul.f32 %v842, %v176
    %v847 = vmul.f32 %v845, %v176
    %v848 = vsub.f32 %v834, %v846
    %v849 = vsub.f32 %v835, %v847
    %v850 = vmul.f32 %v848, %v848
    %v851 = vmul.f32 %v849, %v849
    %v852 = vsel %vm162, %v850, 0.0
    %853 = vadd.xlane.f32.xlu0 %v852
    %v854 = vpop.xlane.xlu0 %853
    %v855 = vsel %vm166, %v851, 0.0
    %856 = vadd.xlane.f32.xlu0 %v855
    %v857 = vpop.xlane.xlu0 %856
    %v858 = vmul.f32 %v854, %v176
    %v859 = vmul.f32 %v857, %v176
    %v860 = vadd.f32 %v858, 1e-06
    %v861 = vadd.f32 %v859, 1e-06
    %v862 = vrsqrt.pop %v860
    %v863 = vmul.f32 %v862, %v860
    %v864 = vmul.f32 %v863, %v862
    %v865 = vmul.f32 0.5, %v864
    %v866 = vsub.f32 1.5, %v865
    %v867 = vmul.f32 %v862, %v866
    %vm868 = vweird.f32 %v860
    %vm869 = vweird.f32 %v862
    %vm870 = vmor %vm868, %vm869
    %v871 = vsel %vm870, %v862, %v867
    %v872 = vrsqrt.pop %v861
    %v873 = vmul.f32 %v872, %v861
    %v874 = vmul.f32 %v873, %v872
    %v875 = vmul.f32 0.5, %v874
    %v876 = vsub.f32 1.5, %v875
    %v877 = vmul.f32 %v872, %v876
    %vm878 = vweird.f32 %v861
    %vm879 = vweird.f32 %v872
    %vm880 = vmor %vm878, %vm879
    %v881 = vsel %vm880, %v872, %v877
    %v882 = vmul.f32 %v848, %v871
    %v883 = vmul.f32 %v849, %v881
    %v885 = vperm.slane %v837, 0
    %v887 = vmul.f32 %v882, %v885
    %v888 = vmul.f32 %v883, %v885
    %v890 = vperm.slane %v839, 0
    %v892 = vadd.f32 %v887, %v890
    %v893 = vadd.f32 %v888, %v890
    %s894 = scalar_lea.vmem %s7, 64
    %v895 = vld [vmem:[%s894] sm:$0xff]
    %v896 = vld [vmem:[%s894 + $0x8] sm:$0xff]
    %v897 = vld [vmem:[%s894 + $0x10] sm:$0xff]
    %v898 = vld [vmem:[%s894 + $0x18] sm:$0xff]
    %s899 = scalar_lea.vmem %s10, 2
    %v900 = vld [vmem:[%s899] sm:$0x1]
    %v902 = vperm.slane %v900, 0
    %v905 = vsel %vm162, %v892, 0
    %v908 = vsel %vm162, %v893, 0
    %910 = vmatpush.msra.mxu0 0.0
    %911 = vmatpush.msra.mxu0 0.0
    %912 = vmatpush.msra.mxu0 0.0
    %913 = vmatpush.msra.mxu0 0.0
    %914 = vmatpush.msra.mxu0 0.0
    %915 = vmatpush.msra.mxu0 0.0
    %916 = vmatpush.msra.mxu0 0.0
    %917 = vmatpush.msra.mxu0 0.0
    %918 = vmatpush.msra.mxu0 0.0
    %919 = vmatpush.msra.mxu0 0.0
    %920 = vmatpush.msra.mxu0 0.0
    %921 = vmatpush.msra.mxu0 0.0
    %922 = vmatpush.msra.mxu0 %v898
    %923 = vmatpush.msra.mxu0 %v897
    %924 = vmatpush.msra.mxu0 %v896
    %925 = vmatpush.msra.mxu0 %v895
    %926 = vmatmul.f32.gmra.mxu0 %v905
    %v927 = vpop.f32.mrf.mxu0
    %v928 = vadd.f32 %v902, %v927
    %929 = vmatmul.f32.gmra.mxu0 %v908
    %v930 = vpop.f32.mrf.mxu0
    %v931 = vadd.f32 %v902, %v930
    %932 = vdwg.mxu0
    %v933 = vmul.f32 %v928, 0.25
    %v934 = vmul.f32 %v931, 0.25
    %s935 = scalar_lea.vmem %s8, 64
    %v936 = vld [vmem:[%s935] sm:$0xff]
    %v937 = vld [vmem:[%s935 + $0x8] sm:$0xff]
    %v938 = vld [vmem:[%s935 + $0x10] sm:$0xff]
    %v939 = vld [vmem:[%s935 + $0x18] sm:$0xff]
    %s940 = scalar_lea.vmem %s11, 2
    %v941 = vld [vmem:[%s940] sm:$0x1]
    %v943 = vperm.slane %v941, 0
    %945 = vmatpush.msra.mxu0 0.0
    %946 = vmatpush.msra.mxu0 0.0
    %947 = vmatpush.msra.mxu0 0.0
    %948 = vmatpush.msra.mxu0 0.0
    %949 = vmatpush.msra.mxu0 0.0
    %950 = vmatpush.msra.mxu0 0.0
    %951 = vmatpush.msra.mxu0 0.0
    %952 = vmatpush.msra.mxu0 0.0
    %953 = vmatpush.msra.mxu0 0.0
    %954 = vmatpush.msra.mxu0 0.0
    %955 = vmatpush.msra.mxu0 0.0
    %956 = vmatpush.msra.mxu0 0.0
    %957 = vmatpush.msra.mxu0 %v939
    %958 = vmatpush.msra.mxu0 %v938
    %959 = vmatpush.msra.mxu0 %v937
    %960 = vmatpush.msra.mxu0 %v936
    %961 = vmatmul.f32.gmra.mxu0 %v905
    %v962 = vpop.f32.mrf.mxu0
    %v963 = vadd.f32 %v943, %v962
    %964 = vmatmul.f32.gmra.mxu0 %v908
    %v965 = vpop.f32.mrf.mxu0
    %v966 = vadd.f32 %v943, %v965
    %967 = vdwg.mxu0
    %s968 = scalar_lea.vmem %s9, 64
    %v969 = vld [vmem:[%s968] sm:$0xff]
    %v970 = vld [vmem:[%s968 + $0x8] sm:$0xff]
    %v971 = vld [vmem:[%s968 + $0x10] sm:$0xff]
    %v972 = vld [vmem:[%s968 + $0x18] sm:$0xff]
    %s973 = scalar_lea.vmem %s12, 2
    %v974 = vld [vmem:[%s973] sm:$0x1]
    %v976 = vperm.slane %v974, 0
    %978 = vmatpush.msra.mxu0 0.0
    %979 = vmatpush.msra.mxu0 0.0
    %980 = vmatpush.msra.mxu0 0.0
    %981 = vmatpush.msra.mxu0 0.0
    %982 = vmatpush.msra.mxu0 0.0
    %983 = vmatpush.msra.mxu0 0.0
    %984 = vmatpush.msra.mxu0 0.0
    %985 = vmatpush.msra.mxu0 0.0
    %986 = vmatpush.msra.mxu0 0.0
    %987 = vmatpush.msra.mxu0 0.0
    %988 = vmatpush.msra.mxu0 0.0
    %989 = vmatpush.msra.mxu0 0.0
    %990 = vmatpush.msra.mxu0 %v972
    %991 = vmatpush.msra.mxu0 %v971
    %992 = vmatpush.msra.mxu0 %v970
    %993 = vmatpush.msra.mxu0 %v969
    %994 = vmatmul.f32.gmra.mxu0 %v905
    %v995 = vpop.f32.mrf.mxu0
    %v996 = vadd.f32 %v976, %v995
    %997 = vmatmul.f32.gmra.mxu0 %v908
    %v998 = vpop.f32.mrf.mxu0
    %v999 = vadd.f32 %v976, %v998
    %1000 = vdwg.mxu0
    %v1002 = vsel %vm326, %v933, 0
    %v1005 = vsel %vm326, %v934, 0
    %v1008 = vsel %vm326, %v963, 0
    %v1011 = vsel %vm326, %v966, 0
    %1013 = vmatpush.xpose.msra.mxu0 0.0
    %1014 = vmatpush.xpose.msra.mxu0 0.0
    %1015 = vmatpush.xpose.msra.mxu0 0.0
    %1016 = vmatpush.xpose.msra.mxu0 0.0
    %1017 = vmatpush.xpose.msra.mxu0 0.0
    %1018 = vmatpush.xpose.msra.mxu0 0.0
    %1019 = vmatpush.xpose.msra.mxu0 0.0
    %1020 = vmatpush.xpose.msra.mxu0 0.0
    %1021 = vmatpush.xpose.msra.mxu0 0.0
    %1022 = vmatpush.xpose.msra.mxu0 0.0
    %1023 = vmatpush.xpose.msra.mxu0 0.0
    %1024 = vmatpush.xpose.msra.mxu0 0.0
    %1025 = vmatpush.xpose.msra.mxu0 0.0
    %1026 = vmatpush.xpose.msra.mxu0 0.0
    %1027 = vmatpush.xpose.msra.mxu0 %v1011
    %1028 = vmatpush.xpose.msra.mxu0 %v1008
    %1029 = vmatmul.f32.gmra.mxu0 %v1002
    %v1030 = vpop.f32.mrf.mxu0
    %v1031 = vadd.f32 %v158, %v1030
    %1032 = vmatmul.f32.gmra.mxu0 %v1005
    %v1033 = vpop.f32.mrf.mxu0
    %v1034 = vadd.f32 %v159, %v1033
    %1035 = vdwg.mxu0
    %v1036 = vsel %vm362, %v1031, -inf
    %1037 = vmax.xlane.f32.xlu0 %v1036
    %v1038 = vpop.xlane.xlu0 %1037
    %v1039 = vsel %vm366, %v1034, -inf
    %1040 = vmax.xlane.f32.xlu0 %v1039
    %v1041 = vpop.xlane.xlu0 %1040
    %v1042 = vsub.f32 %v1031, %v1038
    %v1043 = vsub.f32 %v1034, %v1041
    %v1044 = vmul.f32 %v1042, 1.442695
    %v1045 = vpow.pop %v1044
    %v1046 = vmul.f32 %v1043, 1.442695
    %v1047 = vpow.pop %v1046
    %v1048 = vsel %vm362, %v1045, 0.0
    %1049 = vadd.xlane.f32.xlu0 %v1048
    %v1050 = vpop.xlane.xlu0 %1049
    %v1051 = vsel %vm366, %v1047, 0.0
    %1052 = vadd.xlane.f32.xlu0 %v1051
    %v1053 = vpop.xlane.xlu0 %1052
    %v1054 = vrcp.pop %v1050
    %v1055 = vrcp.pop %v1053
    %v1056 = vmul.f32 %v1045, %v1054
    %v1057 = vmul.f32 %v1047, %v1055
    %v1059 = vsel %vm362, %v1056, 0
    %v1062 = vsel %vm362, %v1057, 0
    %v1065 = vsel %vm392, %v999, 0
    %1067 = vmatpush.msra.mxu0 0.0
    %1068 = vmatpush.msra.mxu0 0.0
    %1069 = vmatpush.msra.mxu0 0.0
    %1070 = vmatpush.msra.mxu0 0.0
    %1071 = vmatpush.msra.mxu0 0.0
    %1072 = vmatpush.msra.mxu0 0.0
    %1073 = vmatpush.msra.mxu0 0.0
    %1074 = vmatpush.msra.mxu0 0.0
    %1075 = vmatpush.msra.mxu0 0.0
    %1076 = vmatpush.msra.mxu0 0.0
    %1077 = vmatpush.msra.mxu0 0.0
    %1078 = vmatpush.msra.mxu0 0.0
    %1079 = vmatpush.msra.mxu0 0.0
    %1080 = vmatpush.msra.mxu0 0.0
    %1081 = vmatpush.msra.mxu0 %v1065
    %1082 = vmatpush.msra.mxu0 %v996
    %1083 = vmatmul.f32.gmra.mxu0 %v1059
    %v1084 = vpop.f32.mrf.mxu0
    %v1085 = vadd.f32 0.0, %v1084
    %1086 = vmatmul.f32.gmra.mxu0 %v1062
    %v1087 = vpop.f32.mrf.mxu0
    %v1088 = vadd.f32 0.0, %v1087
    %1089 = vdwg.mxu0
    %s1090 = scalar_lea.vmem %s13, 32
    %v1091 = vld [vmem:[%s1090] sm:$0xff]
    %v1092 = vld [vmem:[%s1090 + $0x8] sm:$0xff]
    %s1093 = scalar_lea.vmem %s7, 96
    %v1094 = vld [vmem:[%s1093] sm:$0xff]
    %v1095 = vld [vmem:[%s1093 + $0x8] sm:$0xff]
    %v1096 = vld [vmem:[%s1093 + $0x10] sm:$0xff]
    %v1097 = vld [vmem:[%s1093 + $0x18] sm:$0xff]
    %s1098 = scalar_lea.vmem %s10, 3
    %v1099 = vld [vmem:[%s1098] sm:$0x1]
    %v1101 = vperm.slane %v1099, 0
    %1103 = vmatpush.msra.mxu0 0.0
    %1104 = vmatpush.msra.mxu0 0.0
    %1105 = vmatpush.msra.mxu0 0.0
    %1106 = vmatpush.msra.mxu0 0.0
    %1107 = vmatpush.msra.mxu0 0.0
    %1108 = vmatpush.msra.mxu0 0.0
    %1109 = vmatpush.msra.mxu0 0.0
    %1110 = vmatpush.msra.mxu0 0.0
    %1111 = vmatpush.msra.mxu0 0.0
    %1112 = vmatpush.msra.mxu0 0.0
    %1113 = vmatpush.msra.mxu0 0.0
    %1114 = vmatpush.msra.mxu0 0.0
    %1115 = vmatpush.msra.mxu0 %v1097
    %1116 = vmatpush.msra.mxu0 %v1096
    %1117 = vmatpush.msra.mxu0 %v1095
    %1118 = vmatpush.msra.mxu0 %v1094
    %1119 = vmatmul.f32.gmra.mxu0 %v905
    %v1120 = vpop.f32.mrf.mxu0
    %v1121 = vadd.f32 %v1101, %v1120
    %1122 = vmatmul.f32.gmra.mxu0 %v908
    %v1123 = vpop.f32.mrf.mxu0
    %v1124 = vadd.f32 %v1101, %v1123
    %1125 = vdwg.mxu0
    %v1126 = vmul.f32 %v1121, 0.25
    %v1127 = vmul.f32 %v1124, 0.25
    %s1128 = scalar_lea.vmem %s8, 96
    %v1129 = vld [vmem:[%s1128] sm:$0xff]
    %v1130 = vld [vmem:[%s1128 + $0x8] sm:$0xff]
    %v1131 = vld [vmem:[%s1128 + $0x10] sm:$0xff]
    %v1132 = vld [vmem:[%s1128 + $0x18] sm:$0xff]
    %s1133 = scalar_lea.vmem %s11, 3
    %v1134 = vld [vmem:[%s1133] sm:$0x1]
    %v1136 = vperm.slane %v1134, 0
    %1138 = vmatpush.msra.mxu0 0.0
    %1139 = vmatpush.msra.mxu0 0.0
    %1140 = vmatpush.msra.mxu0 0.0
    %1141 = vmatpush.msra.mxu0 0.0
    %1142 = vmatpush.msra.mxu0 0.0
    %1143 = vmatpush.msra.mxu0 0.0
    %1144 = vmatpush.msra.mxu0 0.0
    %1145 = vmatpush.msra.mxu0 0.0
    %1146 = vmatpush.msra.mxu0 0.0
    %1147 = vmatpush.msra.mxu0 0.0
    %1148 = vmatpush.msra.mxu0 0.0
    %1149 = vmatpush.msra.mxu0 0.0
    %1150 = vmatpush.msra.mxu0 %v1132
    %1151 = vmatpush.msra.mxu0 %v1131
    %1152 = vmatpush.msra.mxu0 %v1130
    %1153 = vmatpush.msra.mxu0 %v1129
    %1154 = vmatmul.f32.gmra.mxu0 %v905
    %v1155 = vpop.f32.mrf.mxu0
    %v1156 = vadd.f32 %v1136, %v1155
    %1157 = vmatmul.f32.gmra.mxu0 %v908
    %v1158 = vpop.f32.mrf.mxu0
    %v1159 = vadd.f32 %v1136, %v1158
    %1160 = vdwg.mxu0
    %s1161 = scalar_lea.vmem %s9, 96
    %v1162 = vld [vmem:[%s1161] sm:$0xff]
    %v1163 = vld [vmem:[%s1161 + $0x8] sm:$0xff]
    %v1164 = vld [vmem:[%s1161 + $0x10] sm:$0xff]
    %v1165 = vld [vmem:[%s1161 + $0x18] sm:$0xff]
    %s1166 = scalar_lea.vmem %s12, 3
    %v1167 = vld [vmem:[%s1166] sm:$0x1]
    %v1169 = vperm.slane %v1167, 0
    %1171 = vmatpush.msra.mxu0 0.0
    %1172 = vmatpush.msra.mxu0 0.0
    %1173 = vmatpush.msra.mxu0 0.0
    %1174 = vmatpush.msra.mxu0 0.0
    %1175 = vmatpush.msra.mxu0 0.0
    %1176 = vmatpush.msra.mxu0 0.0
    %1177 = vmatpush.msra.mxu0 0.0
    %1178 = vmatpush.msra.mxu0 0.0
    %1179 = vmatpush.msra.mxu0 0.0
    %1180 = vmatpush.msra.mxu0 0.0
    %1181 = vmatpush.msra.mxu0 0.0
    %1182 = vmatpush.msra.mxu0 0.0
    %1183 = vmatpush.msra.mxu0 %v1165
    %1184 = vmatpush.msra.mxu0 %v1164
    %1185 = vmatpush.msra.mxu0 %v1163
    %1186 = vmatpush.msra.mxu0 %v1162
    %1187 = vmatmul.f32.gmra.mxu0 %v905
    %v1188 = vpop.f32.mrf.mxu0
    %v1189 = vadd.f32 %v1169, %v1188
    %1190 = vmatmul.f32.gmra.mxu0 %v908
    %v1191 = vpop.f32.mrf.mxu0
    %v1192 = vadd.f32 %v1169, %v1191
    %1193 = vdwg.mxu0
    %v1195 = vsel %vm326, %v1126, 0
    %v1198 = vsel %vm326, %v1127, 0
    %v1201 = vsel %vm326, %v1156, 0
    %v1204 = vsel %vm326, %v1159, 0
    %1206 = vmatpush.xpose.msra.mxu0 0.0
    %1207 = vmatpush.xpose.msra.mxu0 0.0
    %1208 = vmatpush.xpose.msra.mxu0 0.0
    %1209 = vmatpush.xpose.msra.mxu0 0.0
    %1210 = vmatpush.xpose.msra.mxu0 0.0
    %1211 = vmatpush.xpose.msra.mxu0 0.0
    %1212 = vmatpush.xpose.msra.mxu0 0.0
    %1213 = vmatpush.xpose.msra.mxu0 0.0
    %1214 = vmatpush.xpose.msra.mxu0 0.0
    %1215 = vmatpush.xpose.msra.mxu0 0.0
    %1216 = vmatpush.xpose.msra.mxu0 0.0
    %1217 = vmatpush.xpose.msra.mxu0 0.0
    %1218 = vmatpush.xpose.msra.mxu0 0.0
    %1219 = vmatpush.xpose.msra.mxu0 0.0
    %1220 = vmatpush.xpose.msra.mxu0 %v1204
    %1221 = vmatpush.xpose.msra.mxu0 %v1201
    %1222 = vmatmul.f32.gmra.mxu0 %v1195
    %v1223 = vpop.f32.mrf.mxu0
    %v1224 = vadd.f32 %v158, %v1223
    %1225 = vmatmul.f32.gmra.mxu0 %v1198
    %v1226 = vpop.f32.mrf.mxu0
    %v1227 = vadd.f32 %v159, %v1226
    %1228 = vdwg.mxu0
    %v1229 = vsel %vm362, %v1224, -inf
    %1230 = vmax.xlane.f32.xlu0 %v1229
    %v1231 = vpop.xlane.xlu0 %1230
    %v1232 = vsel %vm366, %v1227, -inf
    %1233 = vmax.xlane.f32.xlu0 %v1232
    %v1234 = vpop.xlane.xlu0 %1233
    %v1235 = vsub.f32 %v1224, %v1231
    %v1236 = vsub.f32 %v1227, %v1234
    %v1237 = vmul.f32 %v1235, 1.442695
    %v1238 = vpow.pop %v1237
    %v1239 = vmul.f32 %v1236, 1.442695
    %v1240 = vpow.pop %v1239
    %v1241 = vsel %vm362, %v1238, 0.0
    %1242 = vadd.xlane.f32.xlu0 %v1241
    %v1243 = vpop.xlane.xlu0 %1242
    %v1244 = vsel %vm366, %v1240, 0.0
    %1245 = vadd.xlane.f32.xlu0 %v1244
    %v1246 = vpop.xlane.xlu0 %1245
    %v1247 = vrcp.pop %v1243
    %v1248 = vrcp.pop %v1246
    %v1249 = vmul.f32 %v1238, %v1247
    %v1250 = vmul.f32 %v1240, %v1248
    %v1252 = vsel %vm362, %v1249, 0
    %v1255 = vsel %vm362, %v1250, 0
    %v1258 = vsel %vm392, %v1192, 0
    %1260 = vmatpush.msra.mxu0 0.0
    %1261 = vmatpush.msra.mxu0 0.0
    %1262 = vmatpush.msra.mxu0 0.0
    %1263 = vmatpush.msra.mxu0 0.0
    %1264 = vmatpush.msra.mxu0 0.0
    %1265 = vmatpush.msra.mxu0 0.0
    %1266 = vmatpush.msra.mxu0 0.0
    %1267 = vmatpush.msra.mxu0 0.0
    %1268 = vmatpush.msra.mxu0 0.0
    %1269 = vmatpush.msra.mxu0 0.0
    %1270 = vmatpush.msra.mxu0 0.0
    %1271 = vmatpush.msra.mxu0 0.0
    %1272 = vmatpush.msra.mxu0 0.0
    %1273 = vmatpush.msra.mxu0 0.0
    %1274 = vmatpush.msra.mxu0 %v1258
    %1275 = vmatpush.msra.mxu0 %v1189
    %1276 = vmatmul.f32.gmra.mxu0 %v1252
    %v1277 = vpop.f32.mrf.mxu0
    %v1278 = vadd.f32 0.0, %v1277
    %1279 = vmatmul.f32.gmra.mxu0 %v1255
    %v1280 = vpop.f32.mrf.mxu0
    %v1281 = vadd.f32 0.0, %v1280
    %1282 = vdwg.mxu0
    %s1283 = scalar_lea.vmem %s13, 48
    %v1284 = vld [vmem:[%s1283] sm:$0xff]
    %v1285 = vld [vmem:[%s1283 + $0x8] sm:$0xff]
    %v1287 = vsel %vm326, %v1278, 0
    %v1290 = vsel %vm326, %v1281, 0
    %1292 = vmatpush.msra.mxu0 0.0
    %1293 = vmatpush.msra.mxu0 0.0
    %1294 = vmatpush.msra.mxu0 0.0
    %1295 = vmatpush.msra.mxu0 0.0
    %1296 = vmatpush.msra.mxu0 0.0
    %1297 = vmatpush.msra.mxu0 0.0
    %1298 = vmatpush.msra.mxu0 0.0
    %1299 = vmatpush.msra.mxu0 0.0
    %1300 = vmatpush.msra.mxu0 0.0
    %1301 = vmatpush.msra.mxu0 0.0
    %1302 = vmatpush.msra.mxu0 0.0
    %1303 = vmatpush.msra.mxu0 0.0
    %1304 = vmatpush.msra.mxu0 0.0
    %1305 = vmatpush.msra.mxu0 0.0
    %1306 = vmatpush.msra.mxu0 %v1285
    %1307 = vmatpush.msra.mxu0 %v1284
    %1308 = vmatmul.f32.gmra.mxu0 %v1287
    %v1309 = vpop.f32.mrf.mxu0
    %v1310 = vadd.f32 0.0, %v1309
    %1311 = vmatmul.f32.gmra.mxu0 %v1290
    %v1312 = vpop.f32.mrf.mxu0
    %v1313 = vadd.f32 0.0, %v1312
    %1314 = vdwg.mxu0
    %v1316 = vsel %vm326, %v1085, 0
    %v1319 = vsel %vm326, %v1088, 0
    %1321 = vmatpush.msra.mxu0 0.0
    %1322 = vmatpush.msra.mxu0 0.0
    %1323 = vmatpush.msra.mxu0 0.0
    %1324 = vmatpush.msra.mxu0 0.0
    %1325 = vmatpush.msra.mxu0 0.0
    %1326 = vmatpush.msra.mxu0 0.0
    %1327 = vmatpush.msra.mxu0 0.0
    %1328 = vmatpush.msra.mxu0 0.0
    %1329 = vmatpush.msra.mxu0 0.0
    %1330 = vmatpush.msra.mxu0 0.0
    %1331 = vmatpush.msra.mxu0 0.0
    %1332 = vmatpush.msra.mxu0 0.0
    %1333 = vmatpush.msra.mxu0 0.0
    %1334 = vmatpush.msra.mxu0 0.0
    %1335 = vmatpush.msra.mxu0 %v1092
    %1336 = vmatpush.msra.mxu0 %v1091
    %1337 = vmatmul.f32.gmra.mxu0 %v1316
    %v1338 = vpop.f32.mrf.mxu0
    %v1339 = vadd.f32 %v1310, %v1338
    %1340 = vmatmul.f32.gmra.mxu0 %v1319
    %v1341 = vpop.f32.mrf.mxu0
    %v1342 = vadd.f32 %v1313, %v1341
    %1343 = vdwg.mxu0
    %v1344 = vadd.f32 %v834, %v1339
    %v1345 = vadd.f32 %v835, %v1342
    %s1346 = scalar_lea.vmem %s14, 1
    %v1347 = vld [vmem:[%s1346] sm:$0x1]
    %v1349 = vperm.slane %v1347, 0
    %v1351 = vadd.f32 %v1344, %v1349
    %v1352 = vadd.f32 %v1345, %v1349
    %s1353 = scalar_lea.vmem %s15, 1
    %v1354 = vld [vmem:[%s1353] sm:$0x1]
    %s1355 = scalar_lea.vmem %s16, 1
    %v1356 = vld [vmem:[%s1355] sm:$0x1]
    %v1357 = vsel %vm162, %v1351, 0.0
    %1358 = vadd.xlane.f32.xlu0 %v1357
    %v1359 = vpop.xlane.xlu0 %1358
    %v1360 = vsel %vm166, %v1352, 0.0
    %1361 = vadd.xlane.f32.xlu0 %v1360
    %v1362 = vpop.xlane.xlu0 %1361
    %v1363 = vmul.f32 %v1359, %v176
    %v1364 = vmul.f32 %v1362, %v176
    %v1365 = vsub.f32 %v1351, %v1363
    %v1366 = vsub.f32 %v1352, %v1364
    %v1367 = vmul.f32 %v1365, %v1365
    %v1368 = vmul.f32 %v1366, %v1366
    %v1369 = vsel %vm162, %v1367, 0.0
    %1370 = vadd.xlane.f32.xlu0 %v1369
    %v1371 = vpop.xlane.xlu0 %1370
    %v1372 = vsel %vm166, %v1368, 0.0
    %1373 = vadd.xlane.f32.xlu0 %v1372
    %v1374 = vpop.xlane.xlu0 %1373
    %v1375 = vmul.f32 %v1371, %v176
    %v1376 = vmul.f32 %v1374, %v176
    %v1377 = vadd.f32 %v1375, 1e-06
    %v1378 = vadd.f32 %v1376, 1e-06
    %v1379 = vrsqrt.pop %v1377
    %v1380 = vmul.f32 %v1379, %v1377
    %v1381 = vmul.f32 %v1380, %v1379
    %v1382 = vmul.f32 0.5, %v1381
    %v1383 = vsub.f32 1.5, %v1382
    %v1384 = vmul.f32 %v1379, %v1383
    %vm1385 = vweird.f32 %v1377
    %vm1386 = vweird.f32 %v1379
    %vm1387 = vmor %vm1385, %vm1386
    %v1388 = vsel %vm1387, %v1379, %v1384
    %v1389 = vrsqrt.pop %v1378
    %v1390 = vmul.f32 %v1389, %v1378
    %v1391 = vmul.f32 %v1390, %v1389
    %v1392 = vmul.f32 0.5, %v1391
    %v1393 = vsub.f32 1.5, %v1392
    %v1394 = vmul.f32 %v1389, %v1393
    %vm1395 = vweird.f32 %v1378
    %vm1396 = vweird.f32 %v1389
    %vm1397 = vmor %vm1395, %vm1396
    %v1398 = vsel %vm1397, %v1389, %v1394
    %v1399 = vmul.f32 %v1365, %v1388
    %v1400 = vmul.f32 %v1366, %v1398
    %v1402 = vperm.slane %v1354, 0
    %v1404 = vmul.f32 %v1399, %v1402
    %v1405 = vmul.f32 %v1400, %v1402
    %v1407 = vperm.slane %v1356, 0
    %v1409 = vadd.f32 %v1404, %v1407
    %v1410 = vadd.f32 %v1405, %v1407
    %s1411 = scalar_lea.vmem %s17, 32
    %v1412 = vld [vmem:[%s1411] sm:$0xff]
    %v1413 = vld [vmem:[%s1411 + $0x8] sm:$0xff]
    %v1414 = vld [vmem:[%s1411 + $0x10] sm:$0xff]
    %v1415 = vld [vmem:[%s1411 + $0x18] sm:$0xff]
    %s1416 = scalar_lea.vmem %s18, 1
    %v1417 = vld [vmem:[%s1416] sm:$0x1]
    %v1419 = vperm.slane %v1417, 0
    %v1422 = vsel %vm162, %v1409, 0
    %v1425 = vsel %vm162, %v1410, 0
    %1427 = vmatpush.msra.mxu0 0.0
    %1428 = vmatpush.msra.mxu0 0.0
    %1429 = vmatpush.msra.mxu0 0.0
    %1430 = vmatpush.msra.mxu0 0.0
    %1431 = vmatpush.msra.mxu0 0.0
    %1432 = vmatpush.msra.mxu0 0.0
    %1433 = vmatpush.msra.mxu0 0.0
    %1434 = vmatpush.msra.mxu0 0.0
    %1435 = vmatpush.msra.mxu0 0.0
    %1436 = vmatpush.msra.mxu0 0.0
    %1437 = vmatpush.msra.mxu0 0.0
    %1438 = vmatpush.msra.mxu0 0.0
    %1439 = vmatpush.msra.mxu0 %v1415
    %1440 = vmatpush.msra.mxu0 %v1414
    %1441 = vmatpush.msra.mxu0 %v1413
    %1442 = vmatpush.msra.mxu0 %v1412
    %1443 = vmatmul.f32.gmra.mxu0 %v1422
    %v1444 = vpop.f32.mrf.mxu0
    %v1445 = vadd.f32 %v1419, %v1444
    %1446 = vmatmul.f32.gmra.mxu0 %v1425
    %v1447 = vpop.f32.mrf.mxu0
    %v1448 = vadd.f32 %v1419, %v1447
    %1449 = vdwg.mxu0
    %v1450 = vmul.f32 %v1445, 0.5
    %v1451 = vmul.f32 %v1448, 0.5
    %v1452 = vmul.f32 %v1445, 0.044715
    %v1453 = vmul.f32 %v1448, 0.044715
    %v1454 = vmul.f32 %v1452, %v1445
    %v1455 = vmul.f32 %v1453, %v1448
    %v1456 = vmul.f32 %v1454, %v1445
    %v1457 = vmul.f32 %v1455, %v1448
    %v1458 = vadd.f32 %v1445, %v1456
    %v1459 = vadd.f32 %v1448, %v1457
    %v1460 = vmul.f32 %v1458, 0.7978846
    %v1461 = vmul.f32 %v1459, 0.7978846
    %v1462 = vtanh.pop %v1460
    %v1463 = vtanh.pop %v1461
    %v1464 = vadd.f32 %v1462, 1.0
    %v1465 = vadd.f32 %v1463, 1.0
    %v1466 = vmul.f32 %v1450, %v1464
    %v1467 = vmul.f32 %v1451, %v1465
    %s1468 = scalar_lea.vmem %s19, 128
    %v1469 = vld [vmem:[%s1468] sm:$0xff]
    %v1470 = vld [vmem:[%s1468 + $0x8] sm:$0xff]
    %v1471 = vld [vmem:[%s1468 + $0x10] sm:$0xff]
    %v1472 = vld [vmem:[%s1468 + $0x18] sm:$0xff]
    %v1473 = vld [vmem:[%s1468 + $0x20] sm:$0xff]
    %v1474 = vld [vmem:[%s1468 + $0x28] sm:$0xff]
    %v1475 = vld [vmem:[%s1468 + $0x30] sm:$0xff]
    %v1476 = vld [vmem:[%s1468 + $0x38] sm:$0xff]
    %v1477 = vld [vmem:[%s1468 + $0x40] sm:$0xff]
    %v1478 = vld [vmem:[%s1468 + $0x48] sm:$0xff]
    %v1479 = vld [vmem:[%s1468 + $0x50] sm:$0xff]
    %v1480 = vld [vmem:[%s1468 + $0x58] sm:$0xff]
    %v1481 = vld [vmem:[%s1468 + $0x60] sm:$0xff]
    %v1482 = vld [vmem:[%s1468 + $0x68] sm:$0xff]
    %v1483 = vld [vmem:[%s1468 + $0x70] sm:$0xff]
    %v1484 = vld [vmem:[%s1468 + $0x78] sm:$0xff]
    %s1485 = scalar_lea.vmem %s20, 1
    %v1486 = vld [vmem:[%s1485] sm:$0x1]
    %v1488 = vperm.slane %v1486, 0
    %1490 = vmatpush.msra.mxu0 %v1484
    %1491 = vmatpush.msra.mxu0 %v1483
    %1492 = vmatpush.msra.mxu0 %v1482
    %1493 = vmatpush.msra.mxu0 %v1481
    %1494 = vmatpush.msra.mxu0 %v1480
    %1495 = vmatpush.msra.mxu0 %v1479
    %1496 = vmatpush.msra.mxu0 %v1478
    %1497 = vmatpush.msra.mxu0 %v1477
    %1498 = vmatpush.msra.mxu0 %v1476
    %1499 = vmatpush.msra.mxu0 %v1475
    %1500 = vmatpush.msra.mxu0 %v1474
    %1501 = vmatpush.msra.mxu0 %v1473
    %1502 = vmatpush.msra.mxu0 %v1472
    %1503 = vmatpush.msra.mxu0 %v1471
    %1504 = vmatpush.msra.mxu0 %v1470
    %1505 = vmatpush.msra.mxu0 %v1469
    %1506 = vmatmul.f32.gmra.mxu0 %v1466
    %v1507 = vpop.f32.mrf.mxu0
    %v1508 = vadd.f32 %v1488, %v1507
    %1509 = vmatmul.f32.gmra.mxu0 %v1467
    %v1510 = vpop.f32.mrf.mxu0
    %v1511 = vadd.f32 %v1488, %v1510
    %1512 = vdwg.mxu0
    %v1513 = vadd.f32 %v1351, %v1508
    %v1514 = vadd.f32 %v1352, %v1511
    %v1515 = vld [vmem:[%s4] sm:$0x3]
    %v1517 = vsel %vm362, %v1515, 0
    %v1520 = vsel %vm392, %v1514, 0
    %1522 = vmatpush.msra.mxu0 0.0
    %1523 = vmatpush.msra.mxu0 0.0
    %1524 = vmatpush.msra.mxu0 0.0
    %1525 = vmatpush.msra.mxu0 0.0
    %1526 = vmatpush.msra.mxu0 0.0
    %1527 = vmatpush.msra.mxu0 0.0
    %1528 = vmatpush.msra.mxu0 0.0
    %1529 = vmatpush.msra.mxu0 0.0
    %1530 = vmatpush.msra.mxu0 0.0
    %1531 = vmatpush.msra.mxu0 0.0
    %1532 = vmatpush.msra.mxu0 0.0
    %1533 = vmatpush.msra.mxu0 0.0
    %1534 = vmatpush.msra.mxu0 0.0
    %1535 = vmatpush.msra.mxu0 0.0
    %1536 = vmatpush.msra.mxu0 %v1520
    %1537 = vmatpush.msra.mxu0 %v1513
    %1538 = vmatmul.f32.gmra.mxu0 %v1517
    %v1539 = vpop.f32.mrf.mxu0
    %v1540 = vadd.f32 0.0, %v1539
    %1541 = vdwg.mxu0
    %v1542 = vld [vmem:[%s21] sm:$0x1]
    %v1543 = vld [vmem:[%s22] sm:$0x1]
    %vm1544 = vcmask 254976
    %v1545 = vsel %vm1544, %v1540, 0.0
    %1546 = vadd.xlane.f32.xlu0 %v1545
    %v1547 = vpop.xlane.xlu0 %1546
    %v1548 = vmul.f32 %v1547, %v176
    %v1549 = vsub.f32 %v1540, %v1548
    %v1550 = vmul.f32 %v1549, %v1549
    %v1551 = vsel %vm1544, %v1550, 0.0
    %1552 = vadd.xlane.f32.xlu0 %v1551
    %v1553 = vpop.xlane.xlu0 %1552
    %v1554 = vmul.f32 %v1553, %v176
    %v1555 = vadd.f32 %v1554, 1e-06
    %v1556 = vrsqrt.pop %v1555
    %v1557 = vmul.f32 %v1556, %v1555
    %v1558 = vmul.f32 %v1557, %v1556
    %v1559 = vmul.f32 0.5, %v1558
    %v1560 = vsub.f32 1.5, %v1559
    %v1561 = vmul.f32 %v1556, %v1560
    %vm1562 = vweird.f32 %v1555
    %vm1563 = vweird.f32 %v1556
    %vm1564 = vmor %vm1562, %vm1563
    %v1565 = vsel %vm1564, %v1556, %v1561
    %v1566 = vmul.f32 %v1549, %v1565
    %v1568 = vperm.slane %v1542, 0
    %v1570 = vmul.f32 %v1566, %v1568
    %v1572 = vperm.slane %v1543, 0
    %v1574 = vadd.f32 %v1570, %v1572
    %1575 = vst.msk [vmem:[#allocation2] sm:$0x3] %vm1544, %v1574
    // Predicated region
    $region94: #{deit_backbone_forward.1} parent=1 // pred_check
      _
    $region95: #{deit_backbone_forward.1} parent=1 // pred_check_branch
      %1577 = sbr.rel (0) target = $region97
    $region96: #{deit_backbone_forward.1} parent=1 // pred_region
      %1579 = vsyncadd [#allocation3], 0
      %s1581 = sshll.u32 [#allocation2], 4
      %s1582 = int_to_ptr.vmem [resolvable:$true] %s1581
      %s1583 = sshll.u32 %s23, 4
      %s1584 = int_to_ptr.hbm [resolvable:$true] %s1583
      %1586 = dma.vmem_to_hbm [thread:$0]  %s1582, 32, %s1584, [#allocation3]
    $region97: #{deit_backbone_forward.1} parent=1 // pred_fallthru
      _
    // Predicated region
    $region98: #{deit_backbone_forward.1} parent=1 // pred_check
      _
    $region99: #{deit_backbone_forward.1} parent=1 // pred_check_branch
      %1588 = sbr.rel (0) target = $region101
    $region100: #{deit_backbone_forward.1} parent=1 // pred_region
      %1590 = dma.done [#allocation3], 32
    $region101: #{deit_backbone_forward.1} parent=1 // pred_fallthru
      _
    %1591 = vsyncpa [#allocation3], 1

</llo_original>
